<compile_context>
chip_gen: v5e
topology: v5e:2x2
jax: 0.10.0
libtpu: 0.0.40
codegen_flags: <defaults>
</compile_context>

<pallas_src>
import numpy as np
import jax
import jax.numpy as jnp
from jax.experimental import pallas as pl
from jax.experimental.pallas import tpu as pltpu


def _upsample_conv_kernel(w_ref, x_ref, o_ref):
    """One (batch, row-tile) step of fused 2x-nearest-upsample + 3x3 'same' conv.

    w_ref : (16, Cin, 1, LANE) VMEM   lane-tiled phase/tap weights:
                                      [(a*2+b)*4 + (r*2+c), ci, 0, j*Cout+co] = Wp[a,b,r,c,ci,co]
    x_ref : (1, 9, Cin, TH, LANE) VMEM shifted + Cout-broadcast input planes:
                                      [0, dy*3+dx, ci, i, j*Cout+co] = xpad[n, ci, row0+i+dy, j+dx]
    o_ref : (1, 4, TH, LANE) VMEM     phase-major output block:
                                      [0, a*2+b, i, j*Cout+co] = y[n, co, 2*(row0+i)+a, 2j+b]
    """
    cin = x_ref.shape[2]
    th, lane = o_ref.shape[2], o_ref.shape[3]
    for a in (0, 1):
        for b in (0, 1):
            acc = jnp.zeros((th, lane), jnp.float32)
            # 2x2 combined taps per phase: pure VPU broadcast-FMA, no MXU, no relayouts.
            for r in (0, 1):
                for c in (0, 1):
                    for ci in range(cin):
                        x = x_ref[0, (a + r) * 3 + (b + c), ci].astype(jnp.float32)
                        w = w_ref[(a * 2 + b) * 4 + (r * 2 + c), ci].astype(jnp.float32)
                        acc = acc + x * w
            o_ref[0, a * 2 + b] = acc.astype(o_ref.dtype)


def _phase_weights(weight_oihw):
    """Fold the 2x-nearest upsample into the 3x3 conv weights.

    Returns (4, 4, Cin, Cout) f32: [a*2+b, r*2+c, ci, co], where (a, b) is the output
    parity (phase) and (r, c) indexes the 2x2 window of the padded ORIGINAL input at
    (i + a + r, j + b + c).
    """
    Cout, Cin = weight_oihw.shape[0], weight_oihw.shape[1]
    # A[a, r, dy]: original kernel row dy contributes to combined tap row r of phase a.
    A = jnp.array([[[1., 0., 0.], [0., 1., 1.]],
                   [[1., 1., 0.], [0., 0., 1.]]], dtype=jnp.float32)
    wp = jnp.einsum('ard,bce,oide->abrcio', A, A, weight_oihw.astype(jnp.float32))
    return wp.reshape(4, 4, Cin, Cout)


def _pick_row_tile(H, W, Cin, Cout, N, itemsize, budget_bytes=16 << 20):
    """Largest row tile whose double-buffered blocks fit `budget_bytes` of VMEM.

    Keeps the kernel well inside v7x's 64 MiB physical VMEM (the binding constraint of
    the three generations; raise the budget on v5e/v6e's 128 MiB parts if desired) and
    prefers >= 2 total grid steps so both v7x TensorCores can be given work by the
    'parallel' grid axes.
    """
    lane = W * Cout

    def blocks_bytes(th):
        x_blk = 9 * Cin * th * lane          # input block
        o_blk = 4 * th * lane                # output block
        w_tab = 16 * Cin * 8 * lane          # weight table (sublane-padded to 8)
        return 2 * (x_blk + o_blk + w_tab) * itemsize   # double-buffered

    cands = [th for th in range(H, 0, -1) if H % th == 0 and (th % 8 == 0 or th == H)]
    fitting = [th for th in cands if blocks_bytes(th) <= budget_bytes] or [cands[-1]]
    parallel_ok = [th for th in fitting if N * (H // th) >= 2]
    return (parallel_ok or fitting)[0]


def upsampling_nn_forward(x_nchw, weight_oihw, *, row_tile=None):
    """Forward pass of UpsamplingNN.

    x_nchw:      (N, Cin, H, W)
    weight_oihw: (Cout, Cin, 3, 3)   (PyTorch Conv2d weight layout, bias=False)
    returns:     (N, Cout, 2H, 2W)
    """
    N, Cin, H, W = x_nchw.shape
    Cout = weight_oihw.shape[0]
    LANE = W * Cout
    dtype = x_nchw.dtype
    itemsize = jnp.dtype(dtype).itemsize

    TH = _pick_row_tile(H, W, Cin, Cout, N, itemsize) if row_tile is None else row_tile
    if H % TH != 0 or not (TH % 8 == 0 or TH == H):
        raise ValueError(f"row_tile={TH} must divide H={H} and be a multiple of 8 (or == H)")
    T = H // TH
    # Lane-dense (unmasked) stores require LANE % 128 == 0 (test shape: 16*8 = 128).
    # Other shapes remain correct but knowingly fall back to masked partial stores.

    # ---- Host-side staging (layout plumbing only, on the small ORIGINAL input) ----
    # 9 (dy, dx) shifted views of the zero-padded input, broadcast over Cout along lanes:
    #   xb[n, dy*3+dx, ci, i, j*Cout+co] = xpad[n, ci, i+dy, j+dx]
    # This is what lets plain auto-pipelined BlockSpecs express the 1-pixel halo and lets
    # the kernel run with zero in-kernel slices / reshapes / relayouts.
    xpad = jnp.pad(x_nchw, ((0, 0), (0, 0), (1, 1), (1, 1)))        # (N, Cin, H+2, W+2)
    planes = [xpad[:, :, dy:dy + H, dx:dx + W] for dy in range(3) for dx in range(3)]
    xs = jnp.stack(planes, axis=1)                                  # (N, 9, Cin, H, W)
    xb = jnp.broadcast_to(xs[..., None], (N, 9, Cin, H, W, Cout)
                          ).reshape(N, 9, Cin, H, LANE).astype(dtype)

    # Phase/tap-combined weights, pre-tiled along the lane dim (j-major, co-minor):
    #   wb[(a*2+b)*4 + (r*2+c), ci, 0, j*Cout+co] = Wp[a,b,r,c,ci,co]
    wp = _phase_weights(weight_oihw).reshape(16, Cin, Cout)
    wb = jnp.broadcast_to(wp[:, :, None, None, :], (16, Cin, 1, W, Cout)
                          ).reshape(16, Cin, 1, LANE).astype(dtype)

    out = pl.pallas_call(
        _upsample_conv_kernel,
        out_shape=jax.ShapeDtypeStruct((N, 4, H, LANE), dtype),
        grid=(N, T),
        in_specs=[
            # Weight table: constant block index -> DMA'd once, then reused from VMEM.
            pl.BlockSpec((16, Cin, 1, LANE), lambda n, t: (0, 0, 0, 0)),
            # Shifted/broadcast input planes: auto-pipelined row tiles (the halo is baked
            # into the 9 shifted views, so no manual DMA / semaphores are needed).
            pl.BlockSpec((1, 9, Cin, TH, LANE), lambda n, t: (n, 0, 0, t, 0)),
        ],
        out_specs=pl.BlockSpec((1, 4, TH, LANE), lambda n, t: (n, 0, t, 0)),
        compiler_params=pltpu.CompilerParams(
            # No reduction axis: every grid step is independent, so both axes can be
            # sharded across TensorCores (v7x has two per chip).
            dimension_semantics=("parallel", "parallel"),
            # Explicit scoped-VMEM budget; _pick_row_tile keeps blocks well inside it
            # (portable across v5e/v6e 128 MiB and v7x 64 MiB physical VMEM).
            vmem_limit_bytes=32 * 1024 * 1024,
        ),
    )(wb, xb)

    # out[n, a*2+b, i, j*Cout+co] == y[n, co, 2i+a, 2j+b]; a single transpose pass back
    # to the module's NCHW interface (emitting NCHW directly from the kernel would force
    # masked 2W-lane stores).
    y = (out.reshape(N, 2, 2, H, W, Cout)
            .transpose(0, 5, 3, 1, 4, 2)
            .reshape(N, Cout, 2 * H, 2 * W))
    return y


def _reference_forward(x_nchw, weight_oihw):
    """Pure-JAX reference: nearest x2 upsample + conv2d(k=3, s=1, p=1, no bias)."""
    x_up = jnp.repeat(jnp.repeat(x_nchw, 2, axis=2), 2, axis=3)
    return jax.lax.conv_general_dilated(
        x_up, weight_oihw,
        window_strides=(1, 1), padding=((1, 1), (1, 1)),
        dimension_numbers=("NCHW", "OIHW", "NCHW"),
    )


if __name__ == "__main__":
    # Small shapes consistent with the module: batch=2, Cin=4, Cout=8, spatial=16.
    N, Cin, Cout, H, W = 2, 4, 8, 16, 16

    key = jax.random.PRNGKey(0)
    kx, kw = jax.random.split(key)
    x = jax.random.normal(kx, (N, Cin, H, W), dtype=jnp.float32)
    # Deterministic "Kaiming-like" init for Conv2d weight (Cout, Cin, 3, 3), bias=False.
    fan_in = Cin * 3 * 3
    weight = jax.random.uniform(
        kw, (Cout, Cin, 3, 3), dtype=jnp.float32,
        minval=-1.0 / np.sqrt(fan_in), maxval=1.0 / np.sqrt(fan_in))

    # row_tile=8 exercises the multi-row-tile grid (grid = (2 batches, 2 row tiles)) and
    # the halo handling across tile boundaries.
    y = upsampling_nn_forward(x, weight, row_tile=8)
    y = jax.block_until_ready(y)

    y_ref = jax.block_until_ready(_reference_forward(x, weight))
    assert y.shape == (N, Cout, 2 * H, 2 * W), y.shape
    np.testing.assert_allclose(np.asarray(y), np.asarray(y_ref), rtol=1e-4, atol=1e-4)

    print("KERNEL_OK")
</pallas_src>

<mosaic_0001>
module attributes {stable_mosaic.version = 11 : i64} {
  func.func @_upsample_conv_kernel(%arg0: i32, %arg1: i32, %arg2: memref<16x4x1x128xf32, #tpu.memory_space<vmem>>, %arg3: memref<1x9x4x8x128xf32, #tpu.memory_space<vmem>>, %arg4: memref<1x4x8x128xf32, #tpu.memory_space<vmem>>) attributes {dimension_semantics = [#tpu.dimension_semantics<parallel>, #tpu.dimension_semantics<parallel>], iteration_bounds = array<i64: 2, 2>, scalar_prefetch = 0 : i64, scratch_operands = 0 : i64, tpu.core_type = #tpu.core_type<tc>, window_params = [{pipeline_mode = #tpu.pipeline_mode<synchronous>, transform_indices = @transform_0, window_bounds = array<i64: 16, 4, 1, 128>}, {transform_indices = @transform_1, window_bounds = array<i64: 1, 9, 4, 8, 128>}, {transform_indices = @transform_2, window_bounds = array<i64: 1, 4, 8, 128>}]} {
    %cst = arith.constant 0.000000e+00 : f32
    %0 = vector.broadcast %cst : f32 to vector<8x128xf32>
    %c0 = arith.constant 0 : index
    %c0_0 = arith.constant 0 : index
    %c0_1 = arith.constant 0 : index
    %c0_2 = arith.constant 0 : index
    %c0_3 = arith.constant 0 : index
    %1 = vector.load %arg3[%c0, %c0_0, %c0_1, %c0_2, %c0_3] : memref<1x9x4x8x128xf32, #tpu.memory_space<vmem>>, vector<1x1x1x8x128xf32>
    %2 = vector.shape_cast %1 : vector<1x1x1x8x128xf32> to vector<8x128xf32>
    %c0_4 = arith.constant 0 : index
    %c0_5 = arith.constant 0 : index
    %c0_6 = arith.constant 0 : index
    %c0_7 = arith.constant 0 : index
    %3 = vector.load %arg2[%c0_4, %c0_5, %c0_6, %c0_7] : memref<16x4x1x128xf32, #tpu.memory_space<vmem>>, vector<1x1x1x128xf32>
    %4 = vector.shape_cast %3 : vector<1x1x1x128xf32> to vector<1x128xf32>
    %5 = vector.broadcast %4 : vector<1x128xf32> to vector<8x128xf32>
    %6 = arith.mulf %2, %5 : vector<8x128xf32>
    %7 = arith.addf %0, %6 : vector<8x128xf32>
    %c0_8 = arith.constant 0 : index
    %c0_9 = arith.constant 0 : index
    %c1 = arith.constant 1 : index
    %c0_10 = arith.constant 0 : index
    %c0_11 = arith.constant 0 : index
    %8 = vector.load %arg3[%c0_8, %c0_9, %c1, %c0_10, %c0_11] : memref<1x9x4x8x128xf32, #tpu.memory_space<vmem>>, vector<1x1x1x8x128xf32>
    %9 = vector.shape_cast %8 : vector<1x1x1x8x128xf32> to vector<8x128xf32>
    %c0_12 = arith.constant 0 : index
    %c1_13 = arith.constant 1 : index
    %c0_14 = arith.constant 0 : index
    %c0_15 = arith.constant 0 : index
    %10 = vector.load %arg2[%c0_12, %c1_13, %c0_14, %c0_15] : memref<16x4x1x128xf32, #tpu.memory_space<vmem>>, vector<1x1x1x128xf32>
    %11 = vector.shape_cast %10 : vector<1x1x1x128xf32> to vector<1x128xf32>
    %12 = vector.broadcast %11 : vector<1x128xf32> to vector<8x128xf32>
    %13 = arith.mulf %9, %12 : vector<8x128xf32>
    %14 = arith.addf %7, %13 : vector<8x128xf32>
    %c0_16 = arith.constant 0 : index
    %c0_17 = arith.constant 0 : index
    %c2 = arith.constant 2 : index
    %c0_18 = arith.constant 0 : index
    %c0_19 = arith.constant 0 : index
    %15 = vector.load %arg3[%c0_16, %c0_17, %c2, %c0_18, %c0_19] : memref<1x9x4x8x128xf32, #tpu.memory_space<vmem>>, vector<1x1x1x8x128xf32>
    %16 = vector.shape_cast %15 : vector<1x1x1x8x128xf32> to vector<8x128xf32>
    %c0_20 = arith.constant 0 : index
    %c2_21 = arith.constant 2 : index
    %c0_22 = arith.constant 0 : index
    %c0_23 = arith.constant 0 : index
    %17 = vector.load %arg2[%c0_20, %c2_21, %c0_22, %c0_23] : memref<16x4x1x128xf32, #tpu.memory_space<vmem>>, vector<1x1x1x128xf32>
    %18 = vector.shape_cast %17 : vector<1x1x1x128xf32> to vector<1x128xf32>
    %19 = vector.broadcast %18 : vector<1x128xf32> to vector<8x128xf32>
    %20 = arith.mulf %16, %19 : vector<8x128xf32>
    %21 = arith.addf %14, %20 : vector<8x128xf32>
    %c0_24 = arith.constant 0 : index
    %c0_25 = arith.constant 0 : index
    %c3 = arith.constant 3 : index
    %c0_26 = arith.constant 0 : index
    %c0_27 = arith.constant 0 : index
    %22 = vector.load %arg3[%c0_24, %c0_25, %c3, %c0_26, %c0_27] : memref<1x9x4x8x128xf32, #tpu.memory_space<vmem>>, vector<1x1x1x8x128xf32>
    %23 = vector.shape_cast %22 : vector<1x1x1x8x128xf32> to vector<8x128xf32>
    %c0_28 = arith.constant 0 : index
    %c3_29 = arith.constant 3 : index
    %c0_30 = arith.constant 0 : index
    %c0_31 = arith.constant 0 : index
    %24 = vector.load %arg2[%c0_28, %c3_29, %c0_30, %c0_31] : memref<16x4x1x128xf32, #tpu.memory_space<vmem>>, vector<1x1x1x128xf32>
    %25 = vector.shape_cast %24 : vector<1x1x1x128xf32> to vector<1x128xf32>
    %26 = vector.broadcast %25 : vector<1x128xf32> to vector<8x128xf32>
    %27 = arith.mulf %23, %26 : vector<8x128xf32>
    %28 = arith.addf %21, %27 : vector<8x128xf32>
    %c0_32 = arith.constant 0 : index
    %c1_33 = arith.constant 1 : index
    %c0_34 = arith.constant 0 : index
    %c0_35 = arith.constant 0 : index
    %c0_36 = arith.constant 0 : index
    %29 = vector.load %arg3[%c0_32, %c1_33, %c0_34, %c0_35, %c0_36] : memref<1x9x4x8x128xf32, #tpu.memory_space<vmem>>, vector<1x1x1x8x128xf32>
    %30 = vector.shape_cast %29 : vector<1x1x1x8x128xf32> to vector<8x128xf32>
    %c1_37 = arith.constant 1 : index
    %c0_38 = arith.constant 0 : index
    %c0_39 = arith.constant 0 : index
    %c0_40 = arith.constant 0 : index
    %31 = vector.load %arg2[%c1_37, %c0_38, %c0_39, %c0_40] : memref<16x4x1x128xf32, #tpu.memory_space<vmem>>, vector<1x1x1x128xf32>
    %32 = vector.shape_cast %31 : vector<1x1x1x128xf32> to vector<1x128xf32>
    %33 = vector.broadcast %32 : vector<1x128xf32> to vector<8x128xf32>
    %34 = arith.mulf %30, %33 : vector<8x128xf32>
    %35 = arith.addf %28, %34 : vector<8x128xf32>
    %c0_41 = arith.constant 0 : index
    %c1_42 = arith.constant 1 : index
    %c1_43 = arith.constant 1 : index
    %c0_44 = arith.constant 0 : index
    %c0_45 = arith.constant 0 : index
    %36 = vector.load %arg3[%c0_41, %c1_42, %c1_43, %c0_44, %c0_45] : memref<1x9x4x8x128xf32, #tpu.memory_space<vmem>>, vector<1x1x1x8x128xf32>
    %37 = vector.shape_cast %36 : vector<1x1x1x8x128xf32> to vector<8x128xf32>
    %c1_46 = arith.constant 1 : index
    %c1_47 = arith.constant 1 : index
    %c0_48 = arith.constant 0 : index
    %c0_49 = arith.constant 0 : index
    %38 = vector.load %arg2[%c1_46, %c1_47, %c0_48, %c0_49] : memref<16x4x1x128xf32, #tpu.memory_space<vmem>>, vector<1x1x1x128xf32>
    %39 = vector.shape_cast %38 : vector<1x1x1x128xf32> to vector<1x128xf32>
    %40 = vector.broadcast %39 : vector<1x128xf32> to vector<8x128xf32>
    %41 = arith.mulf %37, %40 : vector<8x128xf32>
    %42 = arith.addf %35, %41 : vector<8x128xf32>
    %c0_50 = arith.constant 0 : index
    %c1_51 = arith.constant 1 : index
    %c2_52 = arith.constant 2 : index
    %c0_53 = arith.constant 0 : index
    %c0_54 = arith.constant 0 : index
    %43 = vector.load %arg3[%c0_50, %c1_51, %c2_52, %c0_53, %c0_54] : memref<1x9x4x8x128xf32, #tpu.memory_space<vmem>>, vector<1x1x1x8x128xf32>
    %44 = vector.shape_cast %43 : vector<1x1x1x8x128xf32> to vector<8x128xf32>
    %c1_55 = arith.constant 1 : index
    %c2_56 = arith.constant 2 : index
    %c0_57 = arith.constant 0 : index
    %c0_58 = arith.constant 0 : index
    %45 = vector.load %arg2[%c1_55, %c2_56, %c0_57, %c0_58] : memref<16x4x1x128xf32, #tpu.memory_space<vmem>>, vector<1x1x1x128xf32>
    %46 = vector.shape_cast %45 : vector<1x1x1x128xf32> to vector<1x128xf32>
    %47 = vector.broadcast %46 : vector<1x128xf32> to vector<8x128xf32>
    %48 = arith.mulf %44, %47 : vector<8x128xf32>
    %49 = arith.addf %42, %48 : vector<8x128xf32>
    %c0_59 = arith.constant 0 : index
    %c1_60 = arith.constant 1 : index
    %c3_61 = arith.constant 3 : index
    %c0_62 = arith.constant 0 : index
    %c0_63 = arith.constant 0 : index
    %50 = vector.load %arg3[%c0_59, %c1_60, %c3_61, %c0_62, %c0_63] : memref<1x9x4x8x128xf32, #tpu.memory_space<vmem>>, vector<1x1x1x8x128xf32>
    %51 = vector.shape_cast %50 : vector<1x1x1x8x128xf32> to vector<8x128xf32>
    %c1_64 = arith.constant 1 : index
    %c3_65 = arith.constant 3 : index
    %c0_66 = arith.constant 0 : index
    %c0_67 = arith.constant 0 : index
    %52 = vector.load %arg2[%c1_64, %c3_65, %c0_66, %c0_67] : memref<16x4x1x128xf32, #tpu.memory_space<vmem>>, vector<1x1x1x128xf32>
    %53 = vector.shape_cast %52 : vector<1x1x1x128xf32> to vector<1x128xf32>
    %54 = vector.broadcast %53 : vector<1x128xf32> to vector<8x128xf32>
    %55 = arith.mulf %51, %54 : vector<8x128xf32>
    %56 = arith.addf %49, %55 : vector<8x128xf32>
    %c0_68 = arith.constant 0 : index
    %c3_69 = arith.constant 3 : index
    %c0_70 = arith.constant 0 : index
    %c0_71 = arith.constant 0 : index
    %c0_72 = arith.constant 0 : index
    %57 = vector.load %arg3[%c0_68, %c3_69, %c0_70, %c0_71, %c0_72] : memref<1x9x4x8x128xf32, #tpu.memory_space<vmem>>, vector<1x1x1x8x128xf32>
    %58 = vector.shape_cast %57 : vector<1x1x1x8x128xf32> to vector<8x128xf32>
    %c2_73 = arith.constant 2 : index
    %c0_74 = arith.constant 0 : index
    %c0_75 = arith.constant 0 : index
    %c0_76 = arith.constant 0 : index
    %59 = vector.load %arg2[%c2_73, %c0_74, %c0_75, %c0_76] : memref<16x4x1x128xf32, #tpu.memory_space<vmem>>, vector<1x1x1x128xf32>
    %60 = vector.shape_cast %59 : vector<1x1x1x128xf32> to vector<1x128xf32>
    %61 = vector.broadcast %60 : vector<1x128xf32> to vector<8x128xf32>
    %62 = arith.mulf %58, %61 : vector<8x128xf32>
    %63 = arith.addf %56, %62 : vector<8x128xf32>
    %c0_77 = arith.constant 0 : index
    %c3_78 = arith.constant 3 : index
    %c1_79 = arith.constant 1 : index
    %c0_80 = arith.constant 0 : index
    %c0_81 = arith.constant 0 : index
    %64 = vector.load %arg3[%c0_77, %c3_78, %c1_79, %c0_80, %c0_81] : memref<1x9x4x8x128xf32, #tpu.memory_space<vmem>>, vector<1x1x1x8x128xf32>
    %65 = vector.shape_cast %64 : vector<1x1x1x8x128xf32> to vector<8x128xf32>
    %c2_82 = arith.constant 2 : index
    %c1_83 = arith.constant 1 : index
    %c0_84 = arith.constant 0 : index
    %c0_85 = arith.constant 0 : index
    %66 = vector.load %arg2[%c2_82, %c1_83, %c0_84, %c0_85] : memref<16x4x1x128xf32, #tpu.memory_space<vmem>>, vector<1x1x1x128xf32>
    %67 = vector.shape_cast %66 : vector<1x1x1x128xf32> to vector<1x128xf32>
    %68 = vector.broadcast %67 : vector<1x128xf32> to vector<8x128xf32>
    %69 = arith.mulf %65, %68 : vector<8x128xf32>
    %70 = arith.addf %63, %69 : vector<8x128xf32>
    %c0_86 = arith.constant 0 : index
    %c3_87 = arith.constant 3 : index
    %c2_88 = arith.constant 2 : index
    %c0_89 = arith.constant 0 : index
    %c0_90 = arith.constant 0 : index
    %71 = vector.load %arg3[%c0_86, %c3_87, %c2_88, %c0_89, %c0_90] : memref<1x9x4x8x128xf32, #tpu.memory_space<vmem>>, vector<1x1x1x8x128xf32>
    %72 = vector.shape_cast %71 : vector<1x1x1x8x128xf32> to vector<8x128xf32>
    %c2_91 = arith.constant 2 : index
    %c2_92 = arith.constant 2 : index
    %c0_93 = arith.constant 0 : index
    %c0_94 = arith.constant 0 : index
    %73 = vector.load %arg2[%c2_91, %c2_92, %c0_93, %c0_94] : memref<16x4x1x128xf32, #tpu.memory_space<vmem>>, vector<1x1x1x128xf32>
    %74 = vector.shape_cast %73 : vector<1x1x1x128xf32> to vector<1x128xf32>
    %75 = vector.broadcast %74 : vector<1x128xf32> to vector<8x128xf32>
    %76 = arith.mulf %72, %75 : vector<8x128xf32>
    %77 = arith.addf %70, %76 : vector<8x128xf32>
    %c0_95 = arith.constant 0 : index
    %c3_96 = arith.constant 3 : index
    %c3_97 = arith.constant 3 : index
    %c0_98 = arith.constant 0 : index
    %c0_99 = arith.constant 0 : index
    %78 = vector.load %arg3[%c0_95, %c3_96, %c3_97, %c0_98, %c0_99] : memref<1x9x4x8x128xf32, #tpu.memory_space<vmem>>, vector<1x1x1x8x128xf32>
    %79 = vector.shape_cast %78 : vector<1x1x1x8x128xf32> to vector<8x128xf32>
    %c2_100 = arith.constant 2 : index
    %c3_101 = arith.constant 3 : index
    %c0_102 = arith.constant 0 : index
    %c0_103 = arith.constant 0 : index
    %80 = vector.load %arg2[%c2_100, %c3_101, %c0_102, %c0_103] : memref<16x4x1x128xf32, #tpu.memory_space<vmem>>, vector<1x1x1x128xf32>
    %81 = vector.shape_cast %80 : vector<1x1x1x128xf32> to vector<1x128xf32>
    %82 = vector.broadcast %81 : vector<1x128xf32> to vector<8x128xf32>
    %83 = arith.mulf %79, %82 : vector<8x128xf32>
    %84 = arith.addf %77, %83 : vector<8x128xf32>
    %c0_104 = arith.constant 0 : index
    %c4 = arith.constant 4 : index
    %c0_105 = arith.constant 0 : index
    %c0_106 = arith.constant 0 : index
    %c0_107 = arith.constant 0 : index
    %85 = vector.load %arg3[%c0_104, %c4, %c0_105, %c0_106, %c0_107] : memref<1x9x4x8x128xf32, #tpu.memory_space<vmem>>, vector<1x1x1x8x128xf32>
    %86 = vector.shape_cast %85 : vector<1x1x1x8x128xf32> to vector<8x128xf32>
    %c3_108 = arith.constant 3 : index
    %c0_109 = arith.constant 0 : index
    %c0_110 = arith.constant 0 : index
    %c0_111 = arith.constant 0 : index
    %87 = vector.load %arg2[%c3_108, %c0_109, %c0_110, %c0_111] : memref<16x4x1x128xf32, #tpu.memory_space<vmem>>, vector<1x1x1x128xf32>
    %88 = vector.shape_cast %87 : vector<1x1x1x128xf32> to vector<1x128xf32>
    %89 = vector.broadcast %88 : vector<1x128xf32> to vector<8x128xf32>
    %90 = arith.mulf %86, %89 : vector<8x128xf32>
    %91 = arith.addf %84, %90 : vector<8x128xf32>
    %c0_112 = arith.constant 0 : index
    %c4_113 = arith.constant 4 : index
    %c1_114 = arith.constant 1 : index
    %c0_115 = arith.constant 0 : index
    %c0_116 = arith.constant 0 : index
    %92 = vector.load %arg3[%c0_112, %c4_113, %c1_114, %c0_115, %c0_116] : memref<1x9x4x8x128xf32, #tpu.memory_space<vmem>>, vector<1x1x1x8x128xf32>
    %93 = vector.shape_cast %92 : vector<1x1x1x8x128xf32> to vector<8x128xf32>
    %c3_117 = arith.constant 3 : index
    %c1_118 = arith.constant 1 : index
    %c0_119 = arith.constant 0 : index
    %c0_120 = arith.constant 0 : index
    %94 = vector.load %arg2[%c3_117, %c1_118, %c0_119, %c0_120] : memref<16x4x1x128xf32, #tpu.memory_space<vmem>>, vector<1x1x1x128xf32>
    %95 = vector.shape_cast %94 : vector<1x1x1x128xf32> to vector<1x128xf32>
    %96 = vector.broadcast %95 : vector<1x128xf32> to vector<8x128xf32>
    %97 = arith.mulf %93, %96 : vector<8x128xf32>
    %98 = arith.addf %91, %97 : vector<8x128xf32>
    %c0_121 = arith.constant 0 : index
    %c4_122 = arith.constant 4 : index
    %c2_123 = arith.constant 2 : index
    %c0_124 = arith.constant 0 : index
    %c0_125 = arith.constant 0 : index
    %99 = vector.load %arg3[%c0_121, %c4_122, %c2_123, %c0_124, %c0_125] : memref<1x9x4x8x128xf32, #tpu.memory_space<vmem>>, vector<1x1x1x8x128xf32>
    %100 = vector.shape_cast %99 : vector<1x1x1x8x128xf32> to vector<8x128xf32>
    %c3_126 = arith.constant 3 : index
    %c2_127 = arith.constant 2 : index
    %c0_128 = arith.constant 0 : index
    %c0_129 = arith.constant 0 : index
    %101 = vector.load %arg2[%c3_126, %c2_127, %c0_128, %c0_129] : memref<16x4x1x128xf32, #tpu.memory_space<vmem>>, vector<1x1x1x128xf32>
    %102 = vector.shape_cast %101 : vector<1x1x1x128xf32> to vector<1x128xf32>
    %103 = vector.broadcast %102 : vector<1x128xf32> to vector<8x128xf32>
    %104 = arith.mulf %100, %103 : vector<8x128xf32>
    %105 = arith.addf %98, %104 : vector<8x128xf32>
    %c0_130 = arith.constant 0 : index
    %c4_131 = arith.constant 4 : index
    %c3_132 = arith.constant 3 : index
    %c0_133 = arith.constant 0 : index
    %c0_134 = arith.constant 0 : index
    %106 = vector.load %arg3[%c0_130, %c4_131, %c3_132, %c0_133, %c0_134] : memref<1x9x4x8x128xf32, #tpu.memory_space<vmem>>, vector<1x1x1x8x128xf32>
    %107 = vector.shape_cast %106 : vector<1x1x1x8x128xf32> to vector<8x128xf32>
    %c3_135 = arith.constant 3 : index
    %c3_136 = arith.constant 3 : index
    %c0_137 = arith.constant 0 : index
    %c0_138 = arith.constant 0 : index
    %108 = vector.load %arg2[%c3_135, %c3_136, %c0_137, %c0_138] : memref<16x4x1x128xf32, #tpu.memory_space<vmem>>, vector<1x1x1x128xf32>
    %109 = vector.shape_cast %108 : vector<1x1x1x128xf32> to vector<1x128xf32>
    %110 = vector.broadcast %109 : vector<1x128xf32> to vector<8x128xf32>
    %111 = arith.mulf %107, %110 : vector<8x128xf32>
    %112 = arith.addf %105, %111 : vector<8x128xf32>
    %c0_139 = arith.constant 0 : index
    %c0_140 = arith.constant 0 : index
    %c0_141 = arith.constant 0 : index
    %c0_142 = arith.constant 0 : index
    %113 = vector.load %arg4[%c0_139, %c0_140, %c0_141, %c0_142] : memref<1x4x8x128xf32, #tpu.memory_space<vmem>>, vector<1x1x8x128xf32>
    %114 = vector.shape_cast %113 : vector<1x1x8x128xf32> to vector<8x128xf32>
    %115 = vector.shape_cast %112 : vector<8x128xf32> to vector<1x1x8x128xf32>
    tpu.vector_store %arg4[%c0_139, %c0_140, %c0_141, %c0_142], %115 {strides = array<i32>} : memref<1x4x8x128xf32, #tpu.memory_space<vmem>>, vector<1x1x8x128xf32>,
    %cst_143 = arith.constant 0.000000e+00 : f32
    %116 = vector.broadcast %cst_143 : f32 to vector<8x128xf32>
    %c0_144 = arith.constant 0 : index
    %c1_145 = arith.constant 1 : index
    %c0_146 = arith.constant 0 : index
    %c0_147 = arith.constant 0 : index
    %c0_148 = arith.constant 0 : index
    %117 = vector.load %arg3[%c0_144, %c1_145, %c0_146, %c0_147, %c0_148] : memref<1x9x4x8x128xf32, #tpu.memory_space<vmem>>, vector<1x1x1x8x128xf32>
    %118 = vector.shape_cast %117 : vector<1x1x1x8x128xf32> to vector<8x128xf32>
    %c4_149 = arith.constant 4 : index
    %c0_150 = arith.constant 0 : index
    %c0_151 = arith.constant 0 : index
    %c0_152 = arith.constant 0 : index
    %119 = vector.load %arg2[%c4_149, %c0_150, %c0_151, %c0_152] : memref<16x4x1x128xf32, #tpu.memory_space<vmem>>, vector<1x1x1x128xf32>
    %120 = vector.shape_cast %119 : vector<1x1x1x128xf32> to vector<1x128xf32>
    %121 = vector.broadcast %120 : vector<1x128xf32> to vector<8x128xf32>
    %122 = arith.mulf %118, %121 : vector<8x128xf32>
    %123 = arith.addf %116, %122 : vector<8x128xf32>
    %c0_153 = arith.constant 0 : index
    %c1_154 = arith.constant 1 : index
    %c1_155 = arith.constant 1 : index
    %c0_156 = arith.constant 0 : index
    %c0_157 = arith.constant 0 : index
    %124 = vector.load %arg3[%c0_153, %c1_154, %c1_155, %c0_156, %c0_157] : memref<1x9x4x8x128xf32, #tpu.memory_space<vmem>>, vector<1x1x1x8x128xf32>
    %125 = vector.shape_cast %124 : vector<1x1x1x8x128xf32> to vector<8x128xf32>
    %c4_158 = arith.constant 4 : index
    %c1_159 = arith.constant 1 : index
    %c0_160 = arith.constant 0 : index
    %c0_161 = arith.constant 0 : index
    %126 = vector.load %arg2[%c4_158, %c1_159, %c0_160, %c0_161] : memref<16x4x1x128xf32, #tpu.memory_space<vmem>>, vector<1x1x1x128xf32>
    %127 = vector.shape_cast %126 : vector<1x1x1x128xf32> to vector<1x128xf32>
    %128 = vector.broadcast %127 : vector<1x128xf32> to vector<8x128xf32>
    %129 = arith.mulf %125, %128 : vector<8x128xf32>
    %130 = arith.addf %123, %129 : vector<8x128xf32>
    %c0_162 = arith.constant 0 : index
    %c1_163 = arith.constant 1 : index
    %c2_164 = arith.constant 2 : index
    %c0_165 = arith.constant 0 : index
    %c0_166 = arith.constant 0 : index
    %131 = vector.load %arg3[%c0_162, %c1_163, %c2_164, %c0_165, %c0_166] : memref<1x9x4x8x128xf32, #tpu.memory_space<vmem>>, vector<1x1x1x8x128xf32>
    %132 = vector.shape_cast %131 : vector<1x1x1x8x128xf32> to vector<8x128xf32>
    %c4_167 = arith.constant 4 : index
    %c2_168 = arith.constant 2 : index
    %c0_169 = arith.constant 0 : index
    %c0_170 = arith.constant 0 : index
    %133 = vector.load %arg2[%c4_167, %c2_168, %c0_169, %c0_170] : memref<16x4x1x128xf32, #tpu.memory_space<vmem>>, vector<1x1x1x128xf32>
    %134 = vector.shape_cast %133 : vector<1x1x1x128xf32> to vector<1x128xf32>
    %135 = vector.broadcast %134 : vector<1x128xf32> to vector<8x128xf32>
    %136 = arith.mulf %132, %135 : vector<8x128xf32>
    %137 = arith.addf %130, %136 : vector<8x128xf32>
    %c0_171 = arith.constant 0 : index
    %c1_172 = arith.constant 1 : index
    %c3_173 = arith.constant 3 : index
    %c0_174 = arith.constant 0 : index
    %c0_175 = arith.constant 0 : index
    %138 = vector.load %arg3[%c0_171, %c1_172, %c3_173, %c0_174, %c0_175] : memref<1x9x4x8x128xf32, #tpu.memory_space<vmem>>, vector<1x1x1x8x128xf32>
    %139 = vector.shape_cast %138 : vector<1x1x1x8x128xf32> to vector<8x128xf32>
    %c4_176 = arith.constant 4 : index
    %c3_177 = arith.constant 3 : index
    %c0_178 = arith.constant 0 : index
    %c0_179 = arith.constant 0 : index
    %140 = vector.load %arg2[%c4_176, %c3_177, %c0_178, %c0_179] : memref<16x4x1x128xf32, #tpu.memory_space<vmem>>, vector<1x1x1x128xf32>
    %141 = vector.shape_cast %140 : vector<1x1x1x128xf32> to vector<1x128xf32>
    %142 = vector.broadcast %141 : vector<1x128xf32> to vector<8x128xf32>
    %143 = arith.mulf %139, %142 : vector<8x128xf32>
    %144 = arith.addf %137, %143 : vector<8x128xf32>
    %c0_180 = arith.constant 0 : index
    %c2_181 = arith.constant 2 : index
    %c0_182 = arith.constant 0 : index
    %c0_183 = arith.constant 0 : index
    %c0_184 = arith.constant 0 : index
    %145 = vector.load %arg3[%c0_180, %c2_181, %c0_182, %c0_183, %c0_184] : memref<1x9x4x8x128xf32, #tpu.memory_space<vmem>>, vector<1x1x1x8x128xf32>
    %146 = vector.shape_cast %145 : vector<1x1x1x8x128xf32> to vector<8x128xf32>
    %c5 = arith.constant 5 : index
    %c0_185 = arith.constant 0 : index
    %c0_186 = arith.constant 0 : index
    %c0_187 = arith.constant 0 : index
    %147 = vector.load %arg2[%c5, %c0_185, %c0_186, %c0_187] : memref<16x4x1x128xf32, #tpu.memory_space<vmem>>, vector<1x1x1x128xf32>
    %148 = vector.shape_cast %147 : vector<1x1x1x128xf32> to vector<1x128xf32>
    %149 = vector.broadcast %148 : vector<1x128xf32> to vector<8x128xf32>
    %150 = arith.mulf %146, %149 : vector<8x128xf32>
    %151 = arith.addf %144, %150 : vector<8x128xf32>
    %c0_188 = arith.constant 0 : index
    %c2_189 = arith.constant 2 : index
    %c1_190 = arith.constant 1 : index
    %c0_191 = arith.constant 0 : index
    %c0_192 = arith.constant 0 : index
    %152 = vector.load %arg3[%c0_188, %c2_189, %c1_190, %c0_191, %c0_192] : memref<1x9x4x8x128xf32, #tpu.memory_space<vmem>>, vector<1x1x1x8x128xf32>
    %153 = vector.shape_cast %152 : vector<1x1x1x8x128xf32> to vector<8x128xf32>
    %c5_193 = arith.constant 5 : index
    %c1_194 = arith.constant 1 : index
    %c0_195 = arith.constant 0 : index
    %c0_196 = arith.constant 0 : index
    %154 = vector.load %arg2[%c5_193, %c1_194, %c0_195, %c0_196] : memref<16x4x1x128xf32, #tpu.memory_space<vmem>>, vector<1x1x1x128xf32>
    %155 = vector.shape_cast %154 : vector<1x1x1x128xf32> to vector<1x128xf32>
    %156 = vector.broadcast %155 : vector<1x128xf32> to vector<8x128xf32>
    %157 = arith.mulf %153, %156 : vector<8x128xf32>
    %158 = arith.addf %151, %157 : vector<8x128xf32>
    %c0_197 = arith.constant 0 : index
    %c2_198 = arith.constant 2 : index
    %c2_199 = arith.constant 2 : index
    %c0_200 = arith.constant 0 : index
    %c0_201 = arith.constant 0 : index
    %159 = vector.load %arg3[%c0_197, %c2_198, %c2_199, %c0_200, %c0_201] : memref<1x9x4x8x128xf32, #tpu.memory_space<vmem>>, vector<1x1x1x8x128xf32>
    %160 = vector.shape_cast %159 : vector<1x1x1x8x128xf32> to vector<8x128xf32>
    %c5_202 = arith.constant 5 : index
    %c2_203 = arith.constant 2 : index
    %c0_204 = arith.constant 0 : index
    %c0_205 = arith.constant 0 : index
    %161 = vector.load %arg2[%c5_202, %c2_203, %c0_204, %c0_205] : memref<16x4x1x128xf32, #tpu.memory_space<vmem>>, vector<1x1x1x128xf32>
    %162 = vector.shape_cast %161 : vector<1x1x1x128xf32> to vector<1x128xf32>
    %163 = vector.broadcast %162 : vector<1x128xf32> to vector<8x128xf32>
    %164 = arith.mulf %160, %163 : vector<8x128xf32>
    %165 = arith.addf %158, %164 : vector<8x128xf32>
    %c0_206 = arith.constant 0 : index
    %c2_207 = arith.constant 2 : index
    %c3_208 = arith.constant 3 : index
    %c0_209 = arith.constant 0 : index
    %c0_210 = arith.constant 0 : index
    %166 = vector.load %arg3[%c0_206, %c2_207, %c3_208, %c0_209, %c0_210] : memref<1x9x4x8x128xf32, #tpu.memory_space<vmem>>, vector<1x1x1x8x128xf32>
    %167 = vector.shape_cast %166 : vector<1x1x1x8x128xf32> to vector<8x128xf32>
    %c5_211 = arith.constant 5 : index
    %c3_212 = arith.constant 3 : index
    %c0_213 = arith.constant 0 : index
    %c0_214 = arith.constant 0 : index
    %168 = vector.load %arg2[%c5_211, %c3_212, %c0_213, %c0_214] : memref<16x4x1x128xf32, #tpu.memory_space<vmem>>, vector<1x1x1x128xf32>
    %169 = vector.shape_cast %168 : vector<1x1x1x128xf32> to vector<1x128xf32>
    %170 = vector.broadcast %169 : vector<1x128xf32> to vector<8x128xf32>
    %171 = arith.mulf %167, %170 : vector<8x128xf32>
    %172 = arith.addf %165, %171 : vector<8x128xf32>
    %c0_215 = arith.constant 0 : index
    %c4_216 = arith.constant 4 : index
    %c0_217 = arith.constant 0 : index
    %c0_218 = arith.constant 0 : index
    %c0_219 = arith.constant 0 : index
    %173 = vector.load %arg3[%c0_215, %c4_216, %c0_217, %c0_218, %c0_219] : memref<1x9x4x8x128xf32, #tpu.memory_space<vmem>>, vector<1x1x1x8x128xf32>
    %174 = vector.shape_cast %173 : vector<1x1x1x8x128xf32> to vector<8x128xf32>
    %c6 = arith.constant 6 : index
    %c0_220 = arith.constant 0 : index
    %c0_221 = arith.constant 0 : index
    %c0_222 = arith.constant 0 : index
    %175 = vector.load %arg2[%c6, %c0_220, %c0_221, %c0_222] : memref<16x4x1x128xf32, #tpu.memory_space<vmem>>, vector<1x1x1x128xf32>
    %176 = vector.shape_cast %175 : vector<1x1x1x128xf32> to vector<1x128xf32>
    %177 = vector.broadcast %176 : vector<1x128xf32> to vector<8x128xf32>
    %178 = arith.mulf %174, %177 : vector<8x128xf32>
    %179 = arith.addf %172, %178 : vector<8x128xf32>
    %c0_223 = arith.constant 0 : index
    %c4_224 = arith.constant 4 : index
    %c1_225 = arith.constant 1 : index
    %c0_226 = arith.constant 0 : index
    %c0_227 = arith.constant 0 : index
    %180 = vector.load %arg3[%c0_223, %c4_224, %c1_225, %c0_226, %c0_227] : memref<1x9x4x8x128xf32, #tpu.memory_space<vmem>>, vector<1x1x1x8x128xf32>
    %181 = vector.shape_cast %180 : vector<1x1x1x8x128xf32> to vector<8x128xf32>
    %c6_228 = arith.constant 6 : index
    %c1_229 = arith.constant 1 : index
    %c0_230 = arith.constant 0 : index
    %c0_231 = arith.constant 0 : index
    %182 = vector.load %arg2[%c6_228, %c1_229, %c0_230, %c0_231] : memref<16x4x1x128xf32, #tpu.memory_space<vmem>>, vector<1x1x1x128xf32>
    %183 = vector.shape_cast %182 : vector<1x1x1x128xf32> to vector<1x128xf32>
    %184 = vector.broadcast %183 : vector<1x128xf32> to vector<8x128xf32>
    %185 = arith.mulf %181, %184 : vector<8x128xf32>
    %186 = arith.addf %179, %185 : vector<8x128xf32>
    %c0_232 = arith.constant 0 : index
    %c4_233 = arith.constant 4 : index
    %c2_234 = arith.constant 2 : index
    %c0_235 = arith.constant 0 : index
    %c0_236 = arith.constant 0 : index
    %187 = vector.load %arg3[%c0_232, %c4_233, %c2_234, %c0_235, %c0_236] : memref<1x9x4x8x128xf32, #tpu.memory_space<vmem>>, vector<1x1x1x8x128xf32>
    %188 = vector.shape_cast %187 : vector<1x1x1x8x128xf32> to vector<8x128xf32>
    %c6_237 = arith.constant 6 : index
    %c2_238 = arith.constant 2 : index
    %c0_239 = arith.constant 0 : index
    %c0_240 = arith.constant 0 : index
    %189 = vector.load %arg2[%c6_237, %c2_238, %c0_239, %c0_240] : memref<16x4x1x128xf32, #tpu.memory_space<vmem>>, vector<1x1x1x128xf32>
    %190 = vector.shape_cast %189 : vector<1x1x1x128xf32> to vector<1x128xf32>
    %191 = vector.broadcast %190 : vector<1x128xf32> to vector<8x128xf32>
    %192 = arith.mulf %188, %191 : vector<8x128xf32>
    %193 = arith.addf %186, %192 : vector<8x128xf32>
    %c0_241 = arith.constant 0 : index
    %c4_242 = arith.constant 4 : index
    %c3_243 = arith.constant 3 : index
    %c0_244 = arith.constant 0 : index
    %c0_245 = arith.constant 0 : index
    %194 = vector.load %arg3[%c0_241, %c4_242, %c3_243, %c0_244, %c0_245] : memref<1x9x4x8x128xf32, #tpu.memory_space<vmem>>, vector<1x1x1x8x128xf32>
    %195 = vector.shape_cast %194 : vector<1x1x1x8x128xf32> to vector<8x128xf32>
    %c6_246 = arith.constant 6 : index
    %c3_247 = arith.constant 3 : index
    %c0_248 = arith.constant 0 : index
    %c0_249 = arith.constant 0 : index
    %196 = vector.load %arg2[%c6_246, %c3_247, %c0_248, %c0_249] : memref<16x4x1x128xf32, #tpu.memory_space<vmem>>, vector<1x1x1x128xf32>
    %197 = vector.shape_cast %196 : vector<1x1x1x128xf32> to vector<1x128xf32>
    %198 = vector.broadcast %197 : vector<1x128xf32> to vector<8x128xf32>
    %199 = arith.mulf %195, %198 : vector<8x128xf32>
    %200 = arith.addf %193, %199 : vector<8x128xf32>
    %c0_250 = arith.constant 0 : index
    %c5_251 = arith.constant 5 : index
    %c0_252 = arith.constant 0 : index
    %c0_253 = arith.constant 0 : index
    %c0_254 = arith.constant 0 : index
    %201 = vector.load %arg3[%c0_250, %c5_251, %c0_252, %c0_253, %c0_254] : memref<1x9x4x8x128xf32, #tpu.memory_space<vmem>>, vector<1x1x1x8x128xf32>
    %202 = vector.shape_cast %201 : vector<1x1x1x8x128xf32> to vector<8x128xf32>
    %c7 = arith.constant 7 : index
    %c0_255 = arith.constant 0 : index
    %c0_256 = arith.constant 0 : index
    %c0_257 = arith.constant 0 : index
    %203 = vector.load %arg2[%c7, %c0_255, %c0_256, %c0_257] : memref<16x4x1x128xf32, #tpu.memory_space<vmem>>, vector<1x1x1x128xf32>
    %204 = vector.shape_cast %203 : vector<1x1x1x128xf32> to vector<1x128xf32>
    %205 = vector.broadcast %204 : vector<1x128xf32> to vector<8x128xf32>
    %206 = arith.mulf %202, %205 : vector<8x128xf32>
    %207 = arith.addf %200, %206 : vector<8x128xf32>
    %c0_258 = arith.constant 0 : index
    %c5_259 = arith.constant 5 : index
    %c1_260 = arith.constant 1 : index
    %c0_261 = arith.constant 0 : index
    %c0_262 = arith.constant 0 : index
    %208 = vector.load %arg3[%c0_258, %c5_259, %c1_260, %c0_261, %c0_262] : memref<1x9x4x8x128xf32, #tpu.memory_space<vmem>>, vector<1x1x1x8x128xf32>
    %209 = vector.shape_cast %208 : vector<1x1x1x8x128xf32> to vector<8x128xf32>
    %c7_263 = arith.constant 7 : index
    %c1_264 = arith.constant 1 : index
    %c0_265 = arith.constant 0 : index
    %c0_266 = arith.constant 0 : index
    %210 = vector.load %arg2[%c7_263, %c1_264, %c0_265, %c0_266] : memref<16x4x1x128xf32, #tpu.memory_space<vmem>>, vector<1x1x1x128xf32>
    %211 = vector.shape_cast %210 : vector<1x1x1x128xf32> to vector<1x128xf32>
    %212 = vector.broadcast %211 : vector<1x128xf32> to vector<8x128xf32>
    %213 = arith.mulf %209, %212 : vector<8x128xf32>
    %214 = arith.addf %207, %213 : vector<8x128xf32>
    %c0_267 = arith.constant 0 : index
    %c5_268 = arith.constant 5 : index
    %c2_269 = arith.constant 2 : index
    %c0_270 = arith.constant 0 : index
    %c0_271 = arith.constant 0 : index
    %215 = vector.load %arg3[%c0_267, %c5_268, %c2_269, %c0_270, %c0_271] : memref<1x9x4x8x128xf32, #tpu.memory_space<vmem>>, vector<1x1x1x8x128xf32>
    %216 = vector.shape_cast %215 : vector<1x1x1x8x128xf32> to vector<8x128xf32>
    %c7_272 = arith.constant 7 : index
    %c2_273 = arith.constant 2 : index
    %c0_274 = arith.constant 0 : index
    %c0_275 = arith.constant 0 : index
    %217 = vector.load %arg2[%c7_272, %c2_273, %c0_274, %c0_275] : memref<16x4x1x128xf32, #tpu.memory_space<vmem>>, vector<1x1x1x128xf32>
    %218 = vector.shape_cast %217 : vector<1x1x1x128xf32> to vector<1x128xf32>
    %219 = vector.broadcast %218 : vector<1x128xf32> to vector<8x128xf32>
    %220 = arith.mulf %216, %219 : vector<8x128xf32>
    %221 = arith.addf %214, %220 : vector<8x128xf32>
    %c0_276 = arith.constant 0 : index
    %c5_277 = arith.constant 5 : index
    %c3_278 = arith.constant 3 : index
    %c0_279 = arith.constant 0 : index
    %c0_280 = arith.constant 0 : index
    %222 = vector.load %arg3[%c0_276, %c5_277, %c3_278, %c0_279, %c0_280] : memref<1x9x4x8x128xf32, #tpu.memory_space<vmem>>, vector<1x1x1x8x128xf32>
    %223 = vector.shape_cast %222 : vector<1x1x1x8x128xf32> to vector<8x128xf32>
    %c7_281 = arith.constant 7 : index
    %c3_282 = arith.constant 3 : index
    %c0_283 = arith.constant 0 : index
    %c0_284 = arith.constant 0 : index
    %224 = vector.load %arg2[%c7_281, %c3_282, %c0_283, %c0_284] : memref<16x4x1x128xf32, #tpu.memory_space<vmem>>, vector<1x1x1x128xf32>
    %225 = vector.shape_cast %224 : vector<1x1x1x128xf32> to vector<1x128xf32>
    %226 = vector.broadcast %225 : vector<1x128xf32> to vector<8x128xf32>
    %227 = arith.mulf %223, %226 : vector<8x128xf32>
    %228 = arith.addf %221, %227 : vector<8x128xf32>
    %c0_285 = arith.constant 0 : index
    %c1_286 = arith.constant 1 : index
    %c0_287 = arith.constant 0 : index
    %c0_288 = arith.constant 0 : index
    %229 = vector.load %arg4[%c0_285, %c1_286, %c0_287, %c0_288] : memref<1x4x8x128xf32, #tpu.memory_space<vmem>>, vector<1x1x8x128xf32>
    %230 = vector.shape_cast %229 : vector<1x1x8x128xf32> to vector<8x128xf32>
    %231 = vector.shape_cast %228 : vector<8x128xf32> to vector<1x1x8x128xf32>
    tpu.vector_store %arg4[%c0_285, %c1_286, %c0_287, %c0_288], %231 {strides = array<i32>} : memref<1x4x8x128xf32, #tpu.memory_space<vmem>>, vector<1x1x8x128xf32>,
    %cst_289 = arith.constant 0.000000e+00 : f32
    %232 = vector.broadcast %cst_289 : f32 to vector<8x128xf32>
    %c0_290 = arith.constant 0 : index
    %c3_291 = arith.constant 3 : index
    %c0_292 = arith.constant 0 : index
    %c0_293 = arith.constant 0 : index
    %c0_294 = arith.constant 0 : index
    %233 = vector.load %arg3[%c0_290, %c3_291, %c0_292, %c0_293, %c0_294] : memref<1x9x4x8x128xf32, #tpu.memory_space<vmem>>, vector<1x1x1x8x128xf32>
    %234 = vector.shape_cast %233 : vector<1x1x1x8x128xf32> to vector<8x128xf32>
    %c8 = arith.constant 8 : index
    %c0_295 = arith.constant 0 : index
    %c0_296 = arith.constant 0 : index
    %c0_297 = arith.constant 0 : index
    %235 = vector.load %arg2[%c8, %c0_295, %c0_296, %c0_297] : memref<16x4x1x128xf32, #tpu.memory_space<vmem>>, vector<1x1x1x128xf32>
    %236 = vector.shape_cast %235 : vector<1x1x1x128xf32> to vector<1x128xf32>
    %237 = vector.broadcast %236 : vector<1x128xf32> to vector<8x128xf32>
    %238 = arith.mulf %234, %237 : vector<8x128xf32>
    %239 = arith.addf %232, %238 : vector<8x128xf32>
    %c0_298 = arith.constant 0 : index
    %c3_299 = arith.constant 3 : index
    %c1_300 = arith.constant 1 : index
    %c0_301 = arith.constant 0 : index
    %c0_302 = arith.constant 0 : index
    %240 = vector.load %arg3[%c0_298, %c3_299, %c1_300, %c0_301, %c0_302] : memref<1x9x4x8x128xf32, #tpu.memory_space<vmem>>, vector<1x1x1x8x128xf32>
    %241 = vector.shape_cast %240 : vector<1x1x1x8x128xf32> to vector<8x128xf32>
    %c8_303 = arith.constant 8 : index
    %c1_304 = arith.constant 1 : index
    %c0_305 = arith.constant 0 : index
    %c0_306 = arith.constant 0 : index
    %242 = vector.load %arg2[%c8_303, %c1_304, %c0_305, %c0_306] : memref<16x4x1x128xf32, #tpu.memory_space<vmem>>, vector<1x1x1x128xf32>
    %243 = vector.shape_cast %242 : vector<1x1x1x128xf32> to vector<1x128xf32>
    %244 = vector.broadcast %243 : vector<1x128xf32> to vector<8x128xf32>
    %245 = arith.mulf %241, %244 : vector<8x128xf32>
    %246 = arith.addf %239, %245 : vector<8x128xf32>
    %c0_307 = arith.constant 0 : index
    %c3_308 = arith.constant 3 : index
    %c2_309 = arith.constant 2 : index
    %c0_310 = arith.constant 0 : index
    %c0_311 = arith.constant 0 : index
    %247 = vector.load %arg3[%c0_307, %c3_308, %c2_309, %c0_310, %c0_311] : memref<1x9x4x8x128xf32, #tpu.memory_space<vmem>>, vector<1x1x1x8x128xf32>
    %248 = vector.shape_cast %247 : vector<1x1x1x8x128xf32> to vector<8x128xf32>
    %c8_312 = arith.constant 8 : index
    %c2_313 = arith.constant 2 : index
    %c0_314 = arith.constant 0 : index
    %c0_315 = arith.constant 0 : index
    %249 = vector.load %arg2[%c8_312, %c2_313, %c0_314, %c0_315] : memref<16x4x1x128xf32, #tpu.memory_space<vmem>>, vector<1x1x1x128xf32>
    %250 = vector.shape_cast %249 : vector<1x1x1x128xf32> to vector<1x128xf32>
    %251 = vector.broadcast %250 : vector<1x128xf32> to vector<8x128xf32>
    %252 = arith.mulf %248, %251 : vector<8x128xf32>
    %253 = arith.addf %246, %252 : vector<8x128xf32>
    %c0_316 = arith.constant 0 : index
    %c3_317 = arith.constant 3 : index
    %c3_318 = arith.constant 3 : index
    %c0_319 = arith.constant 0 : index
    %c0_320 = arith.constant 0 : index
    %254 = vector.load %arg3[%c0_316, %c3_317, %c3_318, %c0_319, %c0_320] : memref<1x9x4x8x128xf32, #tpu.memory_space<vmem>>, vector<1x1x1x8x128xf32>
    %255 = vector.shape_cast %254 : vector<1x1x1x8x128xf32> to vector<8x128xf32>
    %c8_321 = arith.constant 8 : index
    %c3_322 = arith.constant 3 : index
    %c0_323 = arith.constant 0 : index
    %c0_324 = arith.constant 0 : index
    %256 = vector.load %arg2[%c8_321, %c3_322, %c0_323, %c0_324] : memref<16x4x1x128xf32, #tpu.memory_space<vmem>>, vector<1x1x1x128xf32>
    %257 = vector.shape_cast %256 : vector<1x1x1x128xf32> to vector<1x128xf32>
    %258 = vector.broadcast %257 : vector<1x128xf32> to vector<8x128xf32>
    %259 = arith.mulf %255, %258 : vector<8x128xf32>
    %260 = arith.addf %253, %259 : vector<8x128xf32>
    %c0_325 = arith.constant 0 : index
    %c4_326 = arith.constant 4 : index
    %c0_327 = arith.constant 0 : index
    %c0_328 = arith.constant 0 : index
    %c0_329 = arith.constant 0 : index
    %261 = vector.load %arg3[%c0_325, %c4_326, %c0_327, %c0_328, %c0_329] : memref<1x9x4x8x128xf32, #tpu.memory_space<vmem>>, vector<1x1x1x8x128xf32>
    %262 = vector.shape_cast %261 : vector<1x1x1x8x128xf32> to vector<8x128xf32>
    %c9 = arith.constant 9 : index
    %c0_330 = arith.constant 0 : index
    %c0_331 = arith.constant 0 : index
    %c0_332 = arith.constant 0 : index
    %263 = vector.load %arg2[%c9, %c0_330, %c0_331, %c0_332] : memref<16x4x1x128xf32, #tpu.memory_space<vmem>>, vector<1x1x1x128xf32>
    %264 = vector.shape_cast %263 : vector<1x1x1x128xf32> to vector<1x128xf32>
    %265 = vector.broadcast %264 : vector<1x128xf32> to vector<8x128xf32>
    %266 = arith.mulf %262, %265 : vector<8x128xf32>
    %267 = arith.addf %260, %266 : vector<8x128xf32>
    %c0_333 = arith.constant 0 : index
    %c4_334 = arith.constant 4 : index
    %c1_335 = arith.constant 1 : index
    %c0_336 = arith.constant 0 : index
    %c0_337 = arith.constant 0 : index
    %268 = vector.load %arg3[%c0_333, %c4_334, %c1_335, %c0_336, %c0_337] : memref<1x9x4x8x128xf32, #tpu.memory_space<vmem>>, vector<1x1x1x8x128xf32>
    %269 = vector.shape_cast %268 : vector<1x1x1x8x128xf32> to vector<8x128xf32>
    %c9_338 = arith.constant 9 : index
    %c1_339 = arith.constant 1 : index
    %c0_340 = arith.constant 0 : index
    %c0_341 = arith.constant 0 : index
    %270 = vector.load %arg2[%c9_338, %c1_339, %c0_340, %c0_341] : memref<16x4x1x128xf32, #tpu.memory_space<vmem>>, vector<1x1x1x128xf32>
    %271 = vector.shape_cast %270 : vector<1x1x1x128xf32> to vector<1x128xf32>
    %272 = vector.broadcast %271 : vector<1x128xf32> to vector<8x128xf32>
    %273 = arith.mulf %269, %272 : vector<8x128xf32>
    %274 = arith.addf %267, %273 : vector<8x128xf32>
    %c0_342 = arith.constant 0 : index
    %c4_343 = arith.constant 4 : index
    %c2_344 = arith.constant 2 : index
    %c0_345 = arith.constant 0 : index
    %c0_346 = arith.constant 0 : index
    %275 = vector.load %arg3[%c0_342, %c4_343, %c2_344, %c0_345, %c0_346] : memref<1x9x4x8x128xf32, #tpu.memory_space<vmem>>, vector<1x1x1x8x128xf32>
    %276 = vector.shape_cast %275 : vector<1x1x1x8x128xf32> to vector<8x128xf32>
    %c9_347 = arith.constant 9 : index
    %c2_348 = arith.constant 2 : index
    %c0_349 = arith.constant 0 : index
    %c0_350 = arith.constant 0 : index
    %277 = vector.load %arg2[%c9_347, %c2_348, %c0_349, %c0_350] : memref<16x4x1x128xf32, #tpu.memory_space<vmem>>, vector<1x1x1x128xf32>
    %278 = vector.shape_cast %277 : vector<1x1x1x128xf32> to vector<1x128xf32>
    %279 = vector.broadcast %278 : vector<1x128xf32> to vector<8x128xf32>
    %280 = arith.mulf %276, %279 : vector<8x128xf32>
    %281 = arith.addf %274, %280 : vector<8x128xf32>
    %c0_351 = arith.constant 0 : index
    %c4_352 = arith.constant 4 : index
    %c3_353 = arith.constant 3 : index
    %c0_354 = arith.constant 0 : index
    %c0_355 = arith.constant 0 : index
    %282 = vector.load %arg3[%c0_351, %c4_352, %c3_353, %c0_354, %c0_355] : memref<1x9x4x8x128xf32, #tpu.memory_space<vmem>>, vector<1x1x1x8x128xf32>
    %283 = vector.shape_cast %282 : vector<1x1x1x8x128xf32> to vector<8x128xf32>
    %c9_356 = arith.constant 9 : index
    %c3_357 = arith.constant 3 : index
    %c0_358 = arith.constant 0 : index
    %c0_359 = arith.constant 0 : index
    %284 = vector.load %arg2[%c9_356, %c3_357, %c0_358, %c0_359] : memref<16x4x1x128xf32, #tpu.memory_space<vmem>>, vector<1x1x1x128xf32>
    %285 = vector.shape_cast %284 : vector<1x1x1x128xf32> to vector<1x128xf32>
    %286 = vector.broadcast %285 : vector<1x128xf32> to vector<8x128xf32>
    %287 = arith.mulf %283, %286 : vector<8x128xf32>
    %288 = arith.addf %281, %287 : vector<8x128xf32>
    %c0_360 = arith.constant 0 : index
    %c6_361 = arith.constant 6 : index
    %c0_362 = arith.constant 0 : index
    %c0_363 = arith.constant 0 : index
    %c0_364 = arith.constant 0 : index
    %289 = vector.load %arg3[%c0_360, %c6_361, %c0_362, %c0_363, %c0_364] : memref<1x9x4x8x128xf32, #tpu.memory_space<vmem>>, vector<1x1x1x8x128xf32>
    %290 = vector.shape_cast %289 : vector<1x1x1x8x128xf32> to vector<8x128xf32>
    %c10 = arith.constant 10 : index
    %c0_365 = arith.constant 0 : index
    %c0_366 = arith.constant 0 : index
    %c0_367 = arith.constant 0 : index
    %291 = vector.load %arg2[%c10, %c0_365, %c0_366, %c0_367] : memref<16x4x1x128xf32, #tpu.memory_space<vmem>>, vector<1x1x1x128xf32>
    %292 = vector.shape_cast %291 : vector<1x1x1x128xf32> to vector<1x128xf32>
    %293 = vector.broadcast %292 : vector<1x128xf32> to vector<8x128xf32>
    %294 = arith.mulf %290, %293 : vector<8x128xf32>
    %295 = arith.addf %288, %294 : vector<8x128xf32>
    %c0_368 = arith.constant 0 : index
    %c6_369 = arith.constant 6 : index
    %c1_370 = arith.constant 1 : index
    %c0_371 = arith.constant 0 : index
    %c0_372 = arith.constant 0 : index
    %296 = vector.load %arg3[%c0_368, %c6_369, %c1_370, %c0_371, %c0_372] : memref<1x9x4x8x128xf32, #tpu.memory_space<vmem>>, vector<1x1x1x8x128xf32>
    %297 = vector.shape_cast %296 : vector<1x1x1x8x128xf32> to vector<8x128xf32>
    %c10_373 = arith.constant 10 : index
    %c1_374 = arith.constant 1 : index
    %c0_375 = arith.constant 0 : index
    %c0_376 = arith.constant 0 : index
    %298 = vector.load %arg2[%c10_373, %c1_374, %c0_375, %c0_376] : memref<16x4x1x128xf32, #tpu.memory_space<vmem>>, vector<1x1x1x128xf32>
    %299 = vector.shape_cast %298 : vector<1x1x1x128xf32> to vector<1x128xf32>
    %300 = vector.broadcast %299 : vector<1x128xf32> to vector<8x128xf32>
    %301 = arith.mulf %297, %300 : vector<8x128xf32>
    %302 = arith.addf %295, %301 : vector<8x128xf32>
    %c0_377 = arith.constant 0 : index
    %c6_378 = arith.constant 6 : index
    %c2_379 = arith.constant 2 : index
    %c0_380 = arith.constant 0 : index
    %c0_381 = arith.constant 0 : index
    %303 = vector.load %arg3[%c0_377, %c6_378, %c2_379, %c0_380, %c0_381] : memref<1x9x4x8x128xf32, #tpu.memory_space<vmem>>, vector<1x1x1x8x128xf32>
    %304 = vector.shape_cast %303 : vector<1x1x1x8x128xf32> to vector<8x128xf32>
    %c10_382 = arith.constant 10 : index
    %c2_383 = arith.constant 2 : index
    %c0_384 = arith.constant 0 : index
    %c0_385 = arith.constant 0 : index
    %305 = vector.load %arg2[%c10_382, %c2_383, %c0_384, %c0_385] : memref<16x4x1x128xf32, #tpu.memory_space<vmem>>, vector<1x1x1x128xf32>
    %306 = vector.shape_cast %305 : vector<1x1x1x128xf32> to vector<1x128xf32>
    %307 = vector.broadcast %306 : vector<1x128xf32> to vector<8x128xf32>
    %308 = arith.mulf %304, %307 : vector<8x128xf32>
    %309 = arith.addf %302, %308 : vector<8x128xf32>
    %c0_386 = arith.constant 0 : index
    %c6_387 = arith.constant 6 : index
    %c3_388 = arith.constant 3 : index
    %c0_389 = arith.constant 0 : index
    %c0_390 = arith.constant 0 : index
    %310 = vector.load %arg3[%c0_386, %c6_387, %c3_388, %c0_389, %c0_390] : memref<1x9x4x8x128xf32, #tpu.memory_space<vmem>>, vector<1x1x1x8x128xf32>
    %311 = vector.shape_cast %310 : vector<1x1x1x8x128xf32> to vector<8x128xf32>
    %c10_391 = arith.constant 10 : index
    %c3_392 = arith.constant 3 : index
    %c0_393 = arith.constant 0 : index
    %c0_394 = arith.constant 0 : index
    %312 = vector.load %arg2[%c10_391, %c3_392, %c0_393, %c0_394] : memref<16x4x1x128xf32, #tpu.memory_space<vmem>>, vector<1x1x1x128xf32>
    %313 = vector.shape_cast %312 : vector<1x1x1x128xf32> to vector<1x128xf32>
    %314 = vector.broadcast %313 : vector<1x128xf32> to vector<8x128xf32>
    %315 = arith.mulf %311, %314 : vector<8x128xf32>
    %316 = arith.addf %309, %315 : vector<8x128xf32>
    %c0_395 = arith.constant 0 : index
    %c7_396 = arith.constant 7 : index
    %c0_397 = arith.constant 0 : index
    %c0_398 = arith.constant 0 : index
    %c0_399 = arith.constant 0 : index
    %317 = vector.load %arg3[%c0_395, %c7_396, %c0_397, %c0_398, %c0_399] : memref<1x9x4x8x128xf32, #tpu.memory_space<vmem>>, vector<1x1x1x8x128xf32>
    %318 = vector.shape_cast %317 : vector<1x1x1x8x128xf32> to vector<8x128xf32>
    %c11 = arith.constant 11 : index
    %c0_400 = arith.constant 0 : index
    %c0_401 = arith.constant 0 : index
    %c0_402 = arith.constant 0 : index
    %319 = vector.load %arg2[%c11, %c0_400, %c0_401, %c0_402] : memref<16x4x1x128xf32, #tpu.memory_space<vmem>>, vector<1x1x1x128xf32>
    %320 = vector.shape_cast %319 : vector<1x1x1x128xf32> to vector<1x128xf32>
    %321 = vector.broadcast %320 : vector<1x128xf32> to vector<8x128xf32>
    %322 = arith.mulf %318, %321 : vector<8x128xf32>
    %323 = arith.addf %316, %322 : vector<8x128xf32>
    %c0_403 = arith.constant 0 : index
    %c7_404 = arith.constant 7 : index
    %c1_405 = arith.constant 1 : index
    %c0_406 = arith.constant 0 : index
    %c0_407 = arith.constant 0 : index
    %324 = vector.load %arg3[%c0_403, %c7_404, %c1_405, %c0_406, %c0_407] : memref<1x9x4x8x128xf32, #tpu.memory_space<vmem>>, vector<1x1x1x8x128xf32>
    %325 = vector.shape_cast %324 : vector<1x1x1x8x128xf32> to vector<8x128xf32>
    %c11_408 = arith.constant 11 : index
    %c1_409 = arith.constant 1 : index
    %c0_410 = arith.constant 0 : index
    %c0_411 = arith.constant 0 : index
    %326 = vector.load %arg2[%c11_408, %c1_409, %c0_410, %c0_411] : memref<16x4x1x128xf32, #tpu.memory_space<vmem>>, vector<1x1x1x128xf32>
    %327 = vector.shape_cast %326 : vector<1x1x1x128xf32> to vector<1x128xf32>
    %328 = vector.broadcast %327 : vector<1x128xf32> to vector<8x128xf32>
    %329 = arith.mulf %325, %328 : vector<8x128xf32>
    %330 = arith.addf %323, %329 : vector<8x128xf32>
    %c0_412 = arith.constant 0 : index
    %c7_413 = arith.constant 7 : index
    %c2_414 = arith.constant 2 : index
    %c0_415 = arith.constant 0 : index
    %c0_416 = arith.constant 0 : index
    %331 = vector.load %arg3[%c0_412, %c7_413, %c2_414, %c0_415, %c0_416] : memref<1x9x4x8x128xf32, #tpu.memory_space<vmem>>, vector<1x1x1x8x128xf32>
    %332 = vector.shape_cast %331 : vector<1x1x1x8x128xf32> to vector<8x128xf32>
    %c11_417 = arith.constant 11 : index
    %c2_418 = arith.constant 2 : index
    %c0_419 = arith.constant 0 : index
    %c0_420 = arith.constant 0 : index
    %333 = vector.load %arg2[%c11_417, %c2_418, %c0_419, %c0_420] : memref<16x4x1x128xf32, #tpu.memory_space<vmem>>, vector<1x1x1x128xf32>
    %334 = vector.shape_cast %333 : vector<1x1x1x128xf32> to vector<1x128xf32>
    %335 = vector.broadcast %334 : vector<1x128xf32> to vector<8x128xf32>
    %336 = arith.mulf %332, %335 : vector<8x128xf32>
    %337 = arith.addf %330, %336 : vector<8x128xf32>
    %c0_421 = arith.constant 0 : index
    %c7_422 = arith.constant 7 : index
    %c3_423 = arith.constant 3 : index
    %c0_424 = arith.constant 0 : index
    %c0_425 = arith.constant 0 : index
    %338 = vector.load %arg3[%c0_421, %c7_422, %c3_423, %c0_424, %c0_425] : memref<1x9x4x8x128xf32, #tpu.memory_space<vmem>>, vector<1x1x1x8x128xf32>
    %339 = vector.shape_cast %338 : vector<1x1x1x8x128xf32> to vector<8x128xf32>
    %c11_426 = arith.constant 11 : index
    %c3_427 = arith.constant 3 : index
    %c0_428 = arith.constant 0 : index
    %c0_429 = arith.constant 0 : index
    %340 = vector.load %arg2[%c11_426, %c3_427, %c0_428, %c0_429] : memref<16x4x1x128xf32, #tpu.memory_space<vmem>>, vector<1x1x1x128xf32>
    %341 = vector.shape_cast %340 : vector<1x1x1x128xf32> to vector<1x128xf32>
    %342 = vector.broadcast %341 : vector<1x128xf32> to vector<8x128xf32>
    %343 = arith.mulf %339, %342 : vector<8x128xf32>
    %344 = arith.addf %337, %343 : vector<8x128xf32>
    %c0_430 = arith.constant 0 : index
    %c2_431 = arith.constant 2 : index
    %c0_432 = arith.constant 0 : index
    %c0_433 = arith.constant 0 : index
    %345 = vector.load %arg4[%c0_430, %c2_431, %c0_432, %c0_433] : memref<1x4x8x128xf32, #tpu.memory_space<vmem>>, vector<1x1x8x128xf32>
    %346 = vector.shape_cast %345 : vector<1x1x8x128xf32> to vector<8x128xf32>
    %347 = vector.shape_cast %344 : vector<8x128xf32> to vector<1x1x8x128xf32>
    tpu.vector_store %arg4[%c0_430, %c2_431, %c0_432, %c0_433], %347 {strides = array<i32>} : memref<1x4x8x128xf32, #tpu.memory_space<vmem>>, vector<1x1x8x128xf32>,
    %cst_434 = arith.constant 0.000000e+00 : f32
    %348 = vector.broadcast %cst_434 : f32 to vector<8x128xf32>
    %c0_435 = arith.constant 0 : index
    %c4_436 = arith.constant 4 : index
    %c0_437 = arith.constant 0 : index
    %c0_438 = arith.constant 0 : index
    %c0_439 = arith.constant 0 : index
    %349 = vector.load %arg3[%c0_435, %c4_436, %c0_437, %c0_438, %c0_439] : memref<1x9x4x8x128xf32, #tpu.memory_space<vmem>>, vector<1x1x1x8x128xf32>
    %350 = vector.shape_cast %349 : vector<1x1x1x8x128xf32> to vector<8x128xf32>
    %c12 = arith.constant 12 : index
    %c0_440 = arith.constant 0 : index
    %c0_441 = arith.constant 0 : index
    %c0_442 = arith.constant 0 : index
    %351 = vector.load %arg2[%c12, %c0_440, %c0_441, %c0_442] : memref<16x4x1x128xf32, #tpu.memory_space<vmem>>, vector<1x1x1x128xf32>
    %352 = vector.shape_cast %351 : vector<1x1x1x128xf32> to vector<1x128xf32>
    %353 = vector.broadcast %352 : vector<1x128xf32> to vector<8x128xf32>
    %354 = arith.mulf %350, %353 : vector<8x128xf32>
    %355 = arith.addf %348, %354 : vector<8x128xf32>
    %c0_443 = arith.constant 0 : index
    %c4_444 = arith.constant 4 : index
    %c1_445 = arith.constant 1 : index
    %c0_446 = arith.constant 0 : index
    %c0_447 = arith.constant 0 : index
    %356 = vector.load %arg3[%c0_443, %c4_444, %c1_445, %c0_446, %c0_447] : memref<1x9x4x8x128xf32, #tpu.memory_space<vmem>>, vector<1x1x1x8x128xf32>
    %357 = vector.shape_cast %356 : vector<1x1x1x8x128xf32> to vector<8x128xf32>
    %c12_448 = arith.constant 12 : index
    %c1_449 = arith.constant 1 : index
    %c0_450 = arith.constant 0 : index
    %c0_451 = arith.constant 0 : index
    %358 = vector.load %arg2[%c12_448, %c1_449, %c0_450, %c0_451] : memref<16x4x1x128xf32, #tpu.memory_space<vmem>>, vector<1x1x1x128xf32>
    %359 = vector.shape_cast %358 : vector<1x1x1x128xf32> to vector<1x128xf32>
    %360 = vector.broadcast %359 : vector<1x128xf32> to vector<8x128xf32>
    %361 = arith.mulf %357, %360 : vector<8x128xf32>
    %362 = arith.addf %355, %361 : vector<8x128xf32>
    %c0_452 = arith.constant 0 : index
    %c4_453 = arith.constant 4 : index
    %c2_454 = arith.constant 2 : index
    %c0_455 = arith.constant 0 : index
    %c0_456 = arith.constant 0 : index
    %363 = vector.load %arg3[%c0_452, %c4_453, %c2_454, %c0_455, %c0_456] : memref<1x9x4x8x128xf32, #tpu.memory_space<vmem>>, vector<1x1x1x8x128xf32>
    %364 = vector.shape_cast %363 : vector<1x1x1x8x128xf32> to vector<8x128xf32>
    %c12_457 = arith.constant 12 : index
    %c2_458 = arith.constant 2 : index
    %c0_459 = arith.constant 0 : index
    %c0_460 = arith.constant 0 : index
    %365 = vector.load %arg2[%c12_457, %c2_458, %c0_459, %c0_460] : memref<16x4x1x128xf32, #tpu.memory_space<vmem>>, vector<1x1x1x128xf32>
    %366 = vector.shape_cast %365 : vector<1x1x1x128xf32> to vector<1x128xf32>
    %367 = vector.broadcast %366 : vector<1x128xf32> to vector<8x128xf32>
    %368 = arith.mulf %364, %367 : vector<8x128xf32>
    %369 = arith.addf %362, %368 : vector<8x128xf32>
    %c0_461 = arith.constant 0 : index
    %c4_462 = arith.constant 4 : index
    %c3_463 = arith.constant 3 : index
    %c0_464 = arith.constant 0 : index
    %c0_465 = arith.constant 0 : index
    %370 = vector.load %arg3[%c0_461, %c4_462, %c3_463, %c0_464, %c0_465] : memref<1x9x4x8x128xf32, #tpu.memory_space<vmem>>, vector<1x1x1x8x128xf32>
    %371 = vector.shape_cast %370 : vector<1x1x1x8x128xf32> to vector<8x128xf32>
    %c12_466 = arith.constant 12 : index
    %c3_467 = arith.constant 3 : index
    %c0_468 = arith.constant 0 : index
    %c0_469 = arith.constant 0 : index
    %372 = vector.load %arg2[%c12_466, %c3_467, %c0_468, %c0_469] : memref<16x4x1x128xf32, #tpu.memory_space<vmem>>, vector<1x1x1x128xf32>
    %373 = vector.shape_cast %372 : vector<1x1x1x128xf32> to vector<1x128xf32>
    %374 = vector.broadcast %373 : vector<1x128xf32> to vector<8x128xf32>
    %375 = arith.mulf %371, %374 : vector<8x128xf32>
    %376 = arith.addf %369, %375 : vector<8x128xf32>
    %c0_470 = arith.constant 0 : index
    %c5_471 = arith.constant 5 : index
    %c0_472 = arith.constant 0 : index
    %c0_473 = arith.constant 0 : index
    %c0_474 = arith.constant 0 : index
    %377 = vector.load %arg3[%c0_470, %c5_471, %c0_472, %c0_473, %c0_474] : memref<1x9x4x8x128xf32, #tpu.memory_space<vmem>>, vector<1x1x1x8x128xf32>
    %378 = vector.shape_cast %377 : vector<1x1x1x8x128xf32> to vector<8x128xf32>
    %c13 = arith.constant 13 : index
    %c0_475 = arith.constant 0 : index
    %c0_476 = arith.constant 0 : index
    %c0_477 = arith.constant 0 : index
    %379 = vector.load %arg2[%c13, %c0_475, %c0_476, %c0_477] : memref<16x4x1x128xf32, #tpu.memory_space<vmem>>, vector<1x1x1x128xf32>
    %380 = vector.shape_cast %379 : vector<1x1x1x128xf32> to vector<1x128xf32>
    %381 = vector.broadcast %380 : vector<1x128xf32> to vector<8x128xf32>
    %382 = arith.mulf %378, %381 : vector<8x128xf32>
    %383 = arith.addf %376, %382 : vector<8x128xf32>
    %c0_478 = arith.constant 0 : index
    %c5_479 = arith.constant 5 : index
    %c1_480 = arith.constant 1 : index
    %c0_481 = arith.constant 0 : index
    %c0_482 = arith.constant 0 : index
    %384 = vector.load %arg3[%c0_478, %c5_479, %c1_480, %c0_481, %c0_482] : memref<1x9x4x8x128xf32, #tpu.memory_space<vmem>>, vector<1x1x1x8x128xf32>
    %385 = vector.shape_cast %384 : vector<1x1x1x8x128xf32> to vector<8x128xf32>
    %c13_483 = arith.constant 13 : index
    %c1_484 = arith.constant 1 : index
    %c0_485 = arith.constant 0 : index
    %c0_486 = arith.constant 0 : index
    %386 = vector.load %arg2[%c13_483, %c1_484, %c0_485, %c0_486] : memref<16x4x1x128xf32, #tpu.memory_space<vmem>>, vector<1x1x1x128xf32>
    %387 = vector.shape_cast %386 : vector<1x1x1x128xf32> to vector<1x128xf32>
    %388 = vector.broadcast %387 : vector<1x128xf32> to vector<8x128xf32>
    %389 = arith.mulf %385, %388 : vector<8x128xf32>
    %390 = arith.addf %383, %389 : vector<8x128xf32>
    %c0_487 = arith.constant 0 : index
    %c5_488 = arith.constant 5 : index
    %c2_489 = arith.constant 2 : index
    %c0_490 = arith.constant 0 : index
    %c0_491 = arith.constant 0 : index
    %391 = vector.load %arg3[%c0_487, %c5_488, %c2_489, %c0_490, %c0_491] : memref<1x9x4x8x128xf32, #tpu.memory_space<vmem>>, vector<1x1x1x8x128xf32>
    %392 = vector.shape_cast %391 : vector<1x1x1x8x128xf32> to vector<8x128xf32>
    %c13_492 = arith.constant 13 : index
    %c2_493 = arith.constant 2 : index
    %c0_494 = arith.constant 0 : index
    %c0_495 = arith.constant 0 : index
    %393 = vector.load %arg2[%c13_492, %c2_493, %c0_494, %c0_495] : memref<16x4x1x128xf32, #tpu.memory_space<vmem>>, vector<1x1x1x128xf32>
    %394 = vector.shape_cast %393 : vector<1x1x1x128xf32> to vector<1x128xf32>
    %395 = vector.broadcast %394 : vector<1x128xf32> to vector<8x128xf32>
    %396 = arith.mulf %392, %395 : vector<8x128xf32>
    %397 = arith.addf %390, %396 : vector<8x128xf32>
    %c0_496 = arith.constant 0 : index
    %c5_497 = arith.constant 5 : index
    %c3_498 = arith.constant 3 : index
    %c0_499 = arith.constant 0 : index
    %c0_500 = arith.constant 0 : index
    %398 = vector.load %arg3[%c0_496, %c5_497, %c3_498, %c0_499, %c0_500] : memref<1x9x4x8x128xf32, #tpu.memory_space<vmem>>, vector<1x1x1x8x128xf32>
    %399 = vector.shape_cast %398 : vector<1x1x1x8x128xf32> to vector<8x128xf32>
    %c13_501 = arith.constant 13 : index
    %c3_502 = arith.constant 3 : index
    %c0_503 = arith.constant 0 : index
    %c0_504 = arith.constant 0 : index
    %400 = vector.load %arg2[%c13_501, %c3_502, %c0_503, %c0_504] : memref<16x4x1x128xf32, #tpu.memory_space<vmem>>, vector<1x1x1x128xf32>
    %401 = vector.shape_cast %400 : vector<1x1x1x128xf32> to vector<1x128xf32>
    %402 = vector.broadcast %401 : vector<1x128xf32> to vector<8x128xf32>
    %403 = arith.mulf %399, %402 : vector<8x128xf32>
    %404 = arith.addf %397, %403 : vector<8x128xf32>
    %c0_505 = arith.constant 0 : index
    %c7_506 = arith.constant 7 : index
    %c0_507 = arith.constant 0 : index
    %c0_508 = arith.constant 0 : index
    %c0_509 = arith.constant 0 : index
    %405 = vector.load %arg3[%c0_505, %c7_506, %c0_507, %c0_508, %c0_509] : memref<1x9x4x8x128xf32, #tpu.memory_space<vmem>>, vector<1x1x1x8x128xf32>
    %406 = vector.shape_cast %405 : vector<1x1x1x8x128xf32> to vector<8x128xf32>
    %c14 = arith.constant 14 : index
    %c0_510 = arith.constant 0 : index
    %c0_511 = arith.constant 0 : index
    %c0_512 = arith.constant 0 : index
    %407 = vector.load %arg2[%c14, %c0_510, %c0_511, %c0_512] : memref<16x4x1x128xf32, #tpu.memory_space<vmem>>, vector<1x1x1x128xf32>
    %408 = vector.shape_cast %407 : vector<1x1x1x128xf32> to vector<1x128xf32>
    %409 = vector.broadcast %408 : vector<1x128xf32> to vector<8x128xf32>
    %410 = arith.mulf %406, %409 : vector<8x128xf32>
    %411 = arith.addf %404, %410 : vector<8x128xf32>
    %c0_513 = arith.constant 0 : index
    %c7_514 = arith.constant 7 : index
    %c1_515 = arith.constant 1 : index
    %c0_516 = arith.constant 0 : index
    %c0_517 = arith.constant 0 : index
    %412 = vector.load %arg3[%c0_513, %c7_514, %c1_515, %c0_516, %c0_517] : memref<1x9x4x8x128xf32, #tpu.memory_space<vmem>>, vector<1x1x1x8x128xf32>
    %413 = vector.shape_cast %412 : vector<1x1x1x8x128xf32> to vector<8x128xf32>
    %c14_518 = arith.constant 14 : index
    %c1_519 = arith.constant 1 : index
    %c0_520 = arith.constant 0 : index
    %c0_521 = arith.constant 0 : index
    %414 = vector.load %arg2[%c14_518, %c1_519, %c0_520, %c0_521] : memref<16x4x1x128xf32, #tpu.memory_space<vmem>>, vector<1x1x1x128xf32>
    %415 = vector.shape_cast %414 : vector<1x1x1x128xf32> to vector<1x128xf32>
    %416 = vector.broadcast %415 : vector<1x128xf32> to vector<8x128xf32>
    %417 = arith.mulf %413, %416 : vector<8x128xf32>
    %418 = arith.addf %411, %417 : vector<8x128xf32>
    %c0_522 = arith.constant 0 : index
    %c7_523 = arith.constant 7 : index
    %c2_524 = arith.constant 2 : index
    %c0_525 = arith.constant 0 : index
    %c0_526 = arith.constant 0 : index
    %419 = vector.load %arg3[%c0_522, %c7_523, %c2_524, %c0_525, %c0_526] : memref<1x9x4x8x128xf32, #tpu.memory_space<vmem>>, vector<1x1x1x8x128xf32>
    %420 = vector.shape_cast %419 : vector<1x1x1x8x128xf32> to vector<8x128xf32>
    %c14_527 = arith.constant 14 : index
    %c2_528 = arith.constant 2 : index
    %c0_529 = arith.constant 0 : index
    %c0_530 = arith.constant 0 : index
    %421 = vector.load %arg2[%c14_527, %c2_528, %c0_529, %c0_530] : memref<16x4x1x128xf32, #tpu.memory_space<vmem>>, vector<1x1x1x128xf32>
    %422 = vector.shape_cast %421 : vector<1x1x1x128xf32> to vector<1x128xf32>
    %423 = vector.broadcast %422 : vector<1x128xf32> to vector<8x128xf32>
    %424 = arith.mulf %420, %423 : vector<8x128xf32>
    %425 = arith.addf %418, %424 : vector<8x128xf32>
    %c0_531 = arith.constant 0 : index
    %c7_532 = arith.constant 7 : index
    %c3_533 = arith.constant 3 : index
    %c0_534 = arith.constant 0 : index
    %c0_535 = arith.constant 0 : index
    %426 = vector.load %arg3[%c0_531, %c7_532, %c3_533, %c0_534, %c0_535] : memref<1x9x4x8x128xf32, #tpu.memory_space<vmem>>, vector<1x1x1x8x128xf32>
    %427 = vector.shape_cast %426 : vector<1x1x1x8x128xf32> to vector<8x128xf32>
    %c14_536 = arith.constant 14 : index
    %c3_537 = arith.constant 3 : index
    %c0_538 = arith.constant 0 : index
    %c0_539 = arith.constant 0 : index
    %428 = vector.load %arg2[%c14_536, %c3_537, %c0_538, %c0_539] : memref<16x4x1x128xf32, #tpu.memory_space<vmem>>, vector<1x1x1x128xf32>
    %429 = vector.shape_cast %428 : vector<1x1x1x128xf32> to vector<1x128xf32>
    %430 = vector.broadcast %429 : vector<1x128xf32> to vector<8x128xf32>
    %431 = arith.mulf %427, %430 : vector<8x128xf32>
    %432 = arith.addf %425, %431 : vector<8x128xf32>
    %c0_540 = arith.constant 0 : index
    %c8_541 = arith.constant 8 : index
    %c0_542 = arith.constant 0 : index
    %c0_543 = arith.constant 0 : index
    %c0_544 = arith.constant 0 : index
    %433 = vector.load %arg3[%c0_540, %c8_541, %c0_542, %c0_543, %c0_544] : memref<1x9x4x8x128xf32, #tpu.memory_space<vmem>>, vector<1x1x1x8x128xf32>
    %434 = vector.shape_cast %433 : vector<1x1x1x8x128xf32> to vector<8x128xf32>
    %c15 = arith.constant 15 : index
    %c0_545 = arith.constant 0 : index
    %c0_546 = arith.constant 0 : index
    %c0_547 = arith.constant 0 : index
    %435 = vector.load %arg2[%c15, %c0_545, %c0_546, %c0_547] : memref<16x4x1x128xf32, #tpu.memory_space<vmem>>, vector<1x1x1x128xf32>
    %436 = vector.shape_cast %435 : vector<1x1x1x128xf32> to vector<1x128xf32>
    %437 = vector.broadcast %436 : vector<1x128xf32> to vector<8x128xf32>
    %438 = arith.mulf %434, %437 : vector<8x128xf32>
    %439 = arith.addf %432, %438 : vector<8x128xf32>
    %c0_548 = arith.constant 0 : index
    %c8_549 = arith.constant 8 : index
    %c1_550 = arith.constant 1 : index
    %c0_551 = arith.constant 0 : index
    %c0_552 = arith.constant 0 : index
    %440 = vector.load %arg3[%c0_548, %c8_549, %c1_550, %c0_551, %c0_552] : memref<1x9x4x8x128xf32, #tpu.memory_space<vmem>>, vector<1x1x1x8x128xf32>
    %441 = vector.shape_cast %440 : vector<1x1x1x8x128xf32> to vector<8x128xf32>
    %c15_553 = arith.constant 15 : index
    %c1_554 = arith.constant 1 : index
    %c0_555 = arith.constant 0 : index
    %c0_556 = arith.constant 0 : index
    %442 = vector.load %arg2[%c15_553, %c1_554, %c0_555, %c0_556] : memref<16x4x1x128xf32, #tpu.memory_space<vmem>>, vector<1x1x1x128xf32>
    %443 = vector.shape_cast %442 : vector<1x1x1x128xf32> to vector<1x128xf32>
    %444 = vector.broadcast %443 : vector<1x128xf32> to vector<8x128xf32>
    %445 = arith.mulf %441, %444 : vector<8x128xf32>
    %446 = arith.addf %439, %445 : vector<8x128xf32>
    %c0_557 = arith.constant 0 : index
    %c8_558 = arith.constant 8 : index
    %c2_559 = arith.constant 2 : index
    %c0_560 = arith.constant 0 : index
    %c0_561 = arith.constant 0 : index
    %447 = vector.load %arg3[%c0_557, %c8_558, %c2_559, %c0_560, %c0_561] : memref<1x9x4x8x128xf32, #tpu.memory_space<vmem>>, vector<1x1x1x8x128xf32>
    %448 = vector.shape_cast %447 : vector<1x1x1x8x128xf32> to vector<8x128xf32>
    %c15_562 = arith.constant 15 : index
    %c2_563 = arith.constant 2 : index
    %c0_564 = arith.constant 0 : index
    %c0_565 = arith.constant 0 : index
    %449 = vector.load %arg2[%c15_562, %c2_563, %c0_564, %c0_565] : memref<16x4x1x128xf32, #tpu.memory_space<vmem>>, vector<1x1x1x128xf32>
    %450 = vector.shape_cast %449 : vector<1x1x1x128xf32> to vector<1x128xf32>
    %451 = vector.broadcast %450 : vector<1x128xf32> to vector<8x128xf32>
    %452 = arith.mulf %448, %451 : vector<8x128xf32>
    %453 = arith.addf %446, %452 : vector<8x128xf32>
    %c0_566 = arith.constant 0 : index
    %c8_567 = arith.constant 8 : index
    %c3_568 = arith.constant 3 : index
    %c0_569 = arith.constant 0 : index
    %c0_570 = arith.constant 0 : index
    %454 = vector.load %arg3[%c0_566, %c8_567, %c3_568, %c0_569, %c0_570] : memref<1x9x4x8x128xf32, #tpu.memory_space<vmem>>, vector<1x1x1x8x128xf32>
    %455 = vector.shape_cast %454 : vector<1x1x1x8x128xf32> to vector<8x128xf32>
    %c15_571 = arith.constant 15 : index
    %c3_572 = arith.constant 3 : index
    %c0_573 = arith.constant 0 : index
    %c0_574 = arith.constant 0 : index
    %456 = vector.load %arg2[%c15_571, %c3_572, %c0_573, %c0_574] : memref<16x4x1x128xf32, #tpu.memory_space<vmem>>, vector<1x1x1x128xf32>
    %457 = vector.shape_cast %456 : vector<1x1x1x128xf32> to vector<1x128xf32>
    %458 = vector.broadcast %457 : vector<1x128xf32> to vector<8x128xf32>
    %459 = arith.mulf %455, %458 : vector<8x128xf32>
    %460 = arith.addf %453, %459 : vector<8x128xf32>
    %c0_575 = arith.constant 0 : index
    %c3_576 = arith.constant 3 : index
    %c0_577 = arith.constant 0 : index
    %c0_578 = arith.constant 0 : index
    %461 = vector.load %arg4[%c0_575, %c3_576, %c0_577, %c0_578] : memref<1x4x8x128xf32, #tpu.memory_space<vmem>>, vector<1x1x8x128xf32>
    %462 = vector.shape_cast %461 : vector<1x1x8x128xf32> to vector<8x128xf32>
    %463 = vector.shape_cast %460 : vector<8x128xf32> to vector<1x1x8x128xf32>
    tpu.vector_store %arg4[%c0_575, %c3_576, %c0_577, %c0_578], %463 {strides = array<i32>} : memref<1x4x8x128xf32, #tpu.memory_space<vmem>>, vector<1x1x8x128xf32>,
    return
  }
  func.func @transform_0(%arg0: i32, %arg1: i32) -> (i32, i32, i32, i32) {
    %c0_i32 = arith.constant 0 : i32
    %c0_i32_0 = arith.constant 0 : i32
    %c0_i32_1 = arith.constant 0 : i32
    %c0_i32_2 = arith.constant 0 : i32
    %c0_i32_3 = arith.constant 0 : i32
    return %c0_i32, %c0_i32_0, %c0_i32_1, %c0_i32_2 : i32, i32, i32, i32
  }
  func.func @transform_1(%arg0: i32, %arg1: i32) -> (i32, i32, i32, i32, i32) {
    %c0_i32 = arith.constant 0 : i32
    %c0_i32_0 = arith.constant 0 : i32
    %c0_i32_1 = arith.constant 0 : i32
    %c0_i32_2 = arith.constant 0 : i32
    return %arg0, %c0_i32, %c0_i32_0, %arg1, %c0_i32_1 : i32, i32, i32, i32, i32
  }
  func.func @transform_2(%arg0: i32, %arg1: i32) -> (i32, i32, i32, i32) {
    %c0_i32 = arith.constant 0 : i32
    %c0_i32_0 = arith.constant 0 : i32
    %c0_i32_1 = arith.constant 0 : i32
    return %arg0, %c0_i32, %arg1, %c0_i32_0 : i32, i32, i32, i32
  }
}

</mosaic_0001>

<llo_original>
// kernel: tpu_custom_call.1
$region0: #{tpu_custom_call.1}
  #allocation0 [shape = 'u32[]', space=smem, size = 0x4, offset = 0x4, fixed_abs, tag = 'smem constant byte address 0x4 - core index']
  #allocation1 [shape = 'u32[72,128]{1,0:T(1,128)}', space=vmem, size = 0x9000, scoped, tag = 'internal scratch']
  %s0 = inlined_call_operand.hbm [shape: f32[16,4,1,128], index: 0, kind: input, shape index: {}]
  %s1 = inlined_call_operand.hbm [shape: f32[2,9,4,16,128], index: 1, kind: input, shape index: {}]
  %s2 = inlined_call_operand.hbm [shape: f32[2,4,16,128], index: 2, kind: output, shape index: {}]
  %s3 = sld [smem:[#allocation0]]
  $region49: #{tpu_custom_call.1} parent=0
    _
  %s5 = ssub.s32 1, %s3
  %s6 = scalar_select 0, %s5, %s3
  $region1: #{tpu_custom_call.1} parent=0
    #allocation2 [shape = 'u8[32768]{0}', space=vmem, size = 0x8000, scoped, tag = 'input window, operand 0, single buffered']
    #allocation3 [shape = 's32[2]{0}', space=sflag, size = 0x8, scoped, tag = 'scoped memory for tpu_custom_call.1']
    #allocation4 [shape = 's32[2]{0}', space=sflag, size = 0x8, scoped, tag = 'scoped memory for tpu_custom_call.1']
    #allocation5 [shape = 'u8[294912]{0}', space=vmem, size = 0x48000, scoped, tag = 'input window, operand 1']
    #allocation6 [shape = 's32[2]{0}', space=sflag, size = 0x8, scoped, tag = 'scoped memory for tpu_custom_call.1']
    #allocation7 [shape = 'u8[32768]{0}', space=vmem, size = 0x8000, scoped, tag = 'output window, operand 0']
    %7 = vsyncpa [#allocation3], 0
    %8 = vsyncpa [#allocation6], 0
    %s9 = scalar_lea.sflag [#allocation6], 1
    %10 = vsyncpa %s9, 0
    %11 = vsyncpa [#allocation4], 0
    %s12 = scalar_lea.sflag [#allocation4], 1
    %13 = vsyncpa %s12, 0
    loop: start=0, step=1, limit=6
    $region2: #{tpu_custom_call.1} parent=1 // loop_pre_header
      _
    $region3: #{tpu_custom_call.1} parent=1 // loop_header
      %s15 = sphi 0, %s19
      %p16 = scmp.ge.s32.totalorder %s15, 6
      %s22 = sphi 0, %s34
      %s23 = sphi 0, %s30
      %s24 = sphi 0, %s22
      %s25 = sphi 0, %s23
      %s26 = sphi 0, %s24
      %s27 = sphi 0, %s25
      %s35 = sphi 0, %s35
      %s37 = sphi 0, %s35
      %s38 = sphi 0, %s37
      %s52 = sphi 0, %s38
      %s60 = sphi 0, %s62
      %s63 = sphi 0, %s60
      %s64 = sphi 0, %s63
      %s80 = sphi 0, %s64
      %s88 = sphi 0, %s90
      %s91 = sphi 0, %s88
      %s92 = sphi 0, %s91
      %s108 = sphi 0, %s92
    $region4: #{tpu_custom_call.1} parent=1 // loop_header_branch
      %18 = sbr.rel (%p16) target = $region8
    $region5: #{tpu_custom_call.1} parent=1 // loop_body
      %s20 = ssub.s32 %s15, 1
      %s21 = ssub.s32 %s15, 2
      %s28 = sadd.s32 1, %s23
      %p29 = scmp.ge.s32.totalorder %s28, 2
      %s30 = scalar_select %p29, 0, %s28
      %s31 = sadd.s32 1, %s22
      %s32 = scalar_select %p29, %s31, %s22
      %p33 = scmp.ge.s32.totalorder %s32, 2
      %s34 = scalar_select %p33, 0, %s32
      %s36 = sadd.s32 %s35, 1
      %p39 = scmp.eq.s32.totalorder %s15, 3
      %p40 = scmp.ne.s32.totalorder %s35, %s37
      %p41 = scmp.eq.s32.totalorder %s15, 0
      %p42 = por %p40, %p41
      %p43 = scmp.ne.s32.totalorder %s35, %s37
      %p44 = scmp.eq.s32.totalorder %s20, 3
      %p45 = por %p43, %p44
      %p46 = scmp.ne.s32.totalorder %s37, %s38
      %p47 = scmp.eq.s32.totalorder %s20, 0
      %p48 = por %p46, %p47
      %p49 = scmp.ne.s32.totalorder %s37, %s38
      %p50 = scmp.eq.s32.totalorder %s21, 3
      %p51 = por %p49, %p50
      %p53 = scmp.ne.s32.totalorder %s38, %s52
      %p54 = scmp.eq.s32.totalorder %s21, 0
      %p55 = por %p53, %p54
      %s56 = ssub.s32 %s22, %s34
      %s57 = ssub.s32 %s23, %s30
      %s58 = sor.u32 %s56, %s57
      %p59 = scmp.eq.s32.totalorder %s58, 0
      %s61 = sadd.s32 %s60, 1
      %s62 = scalar_select %p59, %s60, %s61
      %p65 = pneg %p59
      %p66 = scmp.eq.s32.totalorder %s15, 3
      %p67 = por %p65, %p66
      %p68 = scmp.ne.s32.totalorder %s60, %s63
      %p69 = scmp.eq.s32.totalorder %s15, 0
      %p70 = por %p68, %p69
      %p71 = scmp.ne.s32.totalorder %s60, %s63
      %p72 = scmp.eq.s32.totalorder %s20, 3
      %p73 = por %p71, %p72
      %p74 = scmp.ne.s32.totalorder %s63, %s64
      %p75 = scmp.eq.s32.totalorder %s20, 0
      %p76 = por %p74, %p75
      %p77 = scmp.ne.s32.totalorder %s63, %s64
      %p78 = scmp.eq.s32.totalorder %s21, 3
      %p79 = por %p77, %p78
      %p81 = scmp.ne.s32.totalorder %s64, %s80
      %p82 = scmp.eq.s32.totalorder %s21, 0
      %p83 = por %p81, %p82
      %s84 = ssub.s32 %s22, %s34
      %s85 = ssub.s32 %s23, %s30
      %s86 = sor.u32 %s84, %s85
      %p87 = scmp.eq.s32.totalorder %s86, 0
      %s89 = sadd.s32 %s88, 1
      %s90 = scalar_select %p87, %s88, %s89
      %p93 = pneg %p87
      %p94 = scmp.eq.s32.totalorder %s15, 3
      %p95 = por %p93, %p94
      %p96 = scmp.ne.s32.totalorder %s88, %s91
      %p97 = scmp.eq.s32.totalorder %s15, 0
      %p98 = por %p96, %p97
      %p99 = scmp.ne.s32.totalorder %s88, %s91
      %p100 = scmp.eq.s32.totalorder %s20, 3
      %p101 = por %p99, %p100
      %p102 = scmp.ne.s32.totalorder %s91, %s92
      %p103 = scmp.eq.s32.totalorder %s20, 0
      %p104 = por %p102, %p103
      %p105 = scmp.ne.s32.totalorder %s91, %s92
      %p106 = scmp.eq.s32.totalorder %s21, 3
      %p107 = por %p105, %p106
      %p109 = scmp.ne.s32.totalorder %s92, %s108
      %p110 = scmp.eq.s32.totalorder %s21, 0
      %p111 = por %p109, %p110
      %p112 = scmp.le.s32.totalorder 1, %s15
      %p113 = scmp.lt.s32.totalorder %s15, 5
      %p114 = pnand %p112, %p113
      %p115 = pneg %p114
      // Predicated region
      $region9: #{tpu_custom_call.1} parent=5 // pred_check
        _
      $region10: #{tpu_custom_call.1} parent=5 // pred_check_branch
        %117 = sbr.rel (%p114) target = $region12
      $region11: #{tpu_custom_call.1} parent=5 // pred_region
        %s118 = ssub.s32 %s15, 1
        // Predicated region
        $region13: #{tpu_custom_call.1} parent=11 // pred_check
          %p119 = pneg %p48
        $region14: #{tpu_custom_call.1} parent=11 // pred_check_branch
          %121 = sbr.rel (%p119) target = $region16
        $region15: #{tpu_custom_call.1} parent=11 // pred_region
          %123 = vsyncadd [#allocation3], 0
          %s124 = sshll.u32 %s0, 4
          %s125 = int_to_ptr.hbm [resolvable:$true] %s124
          %s126 = sshll.u32 [#allocation2], 4
          %s127 = int_to_ptr.vmem [resolvable:$true] %s126
          %132 = dma.hbm_to_vmem [thread:$0]  %s125, 1024, %s127, [#allocation3], 16, 16, 1
        $region16: #{tpu_custom_call.1} parent=11 // pred_fallthru
          _
      $region12: #{tpu_custom_call.1} parent=5 // pred_fallthru
        _
      %p133 = scmp.lt.s32.totalorder %s15, 4
      // Predicated region
      $region17: #{tpu_custom_call.1} parent=5 // pred_check
        %p134 = pneg %p133
      $region18: #{tpu_custom_call.1} parent=5 // pred_check_branch
        %136 = sbr.rel (%p134) target = $region20
      $region19: #{tpu_custom_call.1} parent=5 // pred_region
        // Predicated region
        $region21: #{tpu_custom_call.1} parent=19 // pred_check
          %p137 = pneg %p70
        $region22: #{tpu_custom_call.1} parent=19 // pred_check_branch
          %139 = sbr.rel (%p137) target = $region24
        $region23: #{tpu_custom_call.1} parent=19 // pred_region
          %s140 = sand.u32 %s60, 1
          %s141 = scalar_lea.sflag [#allocation6], %s140
          %s142 = sand.u32 %s60, 1
          %s143 = smul.addr %s142, 288
          %s144 = scalar_lea.vmem [#allocation5], %s143
          %146 = vsyncadd %s141, 0
          %s147 = smul.addr %s22, 72
          %s148 = sadd.s32 %s23, %s147
          %s149 = smul.addr %s148, 8
          %s150 = scalar_lea.hbm %s1, %s149
          %s151 = sshll.u32 %s150, 4
          %s152 = int_to_ptr.hbm [resolvable:$true] %s151
          %s153 = sshll.u32 %s144, 4
          %s154 = int_to_ptr.vmem [resolvable:$true] %s153
          %159 = dma.hbm_to_vmem [thread:$0]  %s152, 4608, %s154, %s141, 256, 128, 8
        $region24: #{tpu_custom_call.1} parent=19 // pred_fallthru
          _
      $region20: #{tpu_custom_call.1} parent=5 // pred_fallthru
        _
      %p160 = scmp.le.s32.totalorder 1, %s15
      %p161 = scmp.lt.s32.totalorder %s15, 5
      %p162 = pnand %p160, %p161
      %p163 = pneg %p162
      // Predicated region
      $region25: #{tpu_custom_call.1} parent=5 // pred_check
        _
      $region26: #{tpu_custom_call.1} parent=5 // pred_check_branch
        %165 = sbr.rel (%p162) target = $region28
      $region27: #{tpu_custom_call.1} parent=5 // pred_region
        %s166 = ssub.s32 %s15, 1
        // Predicated region
        $region29: #{tpu_custom_call.1} parent=27 // pred_check
          %p167 = pneg %p48
        $region30: #{tpu_custom_call.1} parent=27 // pred_check_branch
          %169 = sbr.rel (%p167) target = $region32
        $region31: #{tpu_custom_call.1} parent=27 // pred_region
          %171 = dma.done [#allocation3], 1024
        $region32: #{tpu_custom_call.1} parent=27 // pred_fallthru
          _
        %s172 = sand.u32 %s63, 1
        %s173 = scalar_lea.sflag [#allocation6], %s172
        %s174 = sand.u32 %s63, 1
        %s175 = smul.addr %s174, 288
        %s176 = scalar_lea.vmem [#allocation5], %s175
        // Predicated region
        $region33: #{tpu_custom_call.1} parent=27 // pred_check
          %p177 = pneg %p76
        $region34: #{tpu_custom_call.1} parent=27 // pred_check_branch
          %179 = sbr.rel (%p177) target = $region36
        $region35: #{tpu_custom_call.1} parent=27 // pred_region
          %181 = dma.done %s173, 4608
        $region36: #{tpu_custom_call.1} parent=27 // pred_fallthru
          _
        %p182 = pneg %p48
        %p183 = pneg %p45
        %s184 = sand.u32 %s63, 1
        %s185 = scalar_lea.sflag [#allocation6], %s184
        %s186 = sand.u32 %s63, 1
        %s187 = smul.addr %s186, 288
        %s188 = scalar_lea.vmem [#allocation5], %s187
        %p189 = pneg %p76
        %p190 = pneg %p73
        %p191 = pneg %p104
        %p192 = pneg %p101
        %s193 = sand.u32 %s91, 1
        %s194 = scalar_lea.sflag [#allocation4], %s193
        %s195 = sand.u32 %s91, 1
        %s196 = smul.addr %s195, 32
        %s197 = scalar_lea.vmem [#allocation7], %s196
        %v198 = vld [vmem:[%s176] sm:$0xff]
        %v199 = vld [vmem:[#allocation2] sm:$0x1]
        %v201 = vperm.slane %v199, 0
        %v203 = vmul.f32 %v198, %v201
        %v204 = vadd.f32 %v203, 0.0
        %s205 = scalar_lea.vmem %s176, 8 [#allocation5]
        %v206 = vld [vmem:[%s205] sm:$0xff]
        %s207 = scalar_lea.vmem [#allocation2], 1
        %v208 = vld [vmem:[%s207] sm:$0x1]
        %v210 = vperm.slane %v208, 0
        %v212 = vmul.f32 %v206, %v210
        %v213 = vadd.f32 %v204, %v212
        %s214 = scalar_lea.vmem %s176, 16 [#allocation5]
        %v215 = vld [vmem:[%s214] sm:$0xff]
        %s216 = scalar_lea.vmem [#allocation2], 2
        %v217 = vld [vmem:[%s216] sm:$0x1]
        %v219 = vperm.slane %v217, 0
        %v221 = vmul.f32 %v215, %v219
        %v222 = vadd.f32 %v213, %v221
        %s223 = scalar_lea.vmem %s176, 24 [#allocation5]
        %v224 = vld [vmem:[%s223] sm:$0xff]
        %s225 = scalar_lea.vmem [#allocation2], 3
        %v226 = vld [vmem:[%s225] sm:$0x1]
        %v228 = vperm.slane %v226, 0
        %v230 = vmul.f32 %v224, %v228
        %v231 = vadd.f32 %v222, %v230
        %s232 = scalar_lea.vmem %s176, 32 [#allocation5]
        %v233 = vld [vmem:[%s232] sm:$0xff]
        %s234 = scalar_lea.vmem [#allocation2], 4
        %v235 = vld [vmem:[%s234] sm:$0x1]
        %v237 = vperm.slane %v235, 0
        %v239 = vmul.f32 %v233, %v237
        %v240 = vadd.f32 %v231, %v239
        %s241 = scalar_lea.vmem %s176, 40 [#allocation5]
        %v242 = vld [vmem:[%s241] sm:$0xff]
        %s243 = scalar_lea.vmem [#allocation2], 5
        %v244 = vld [vmem:[%s243] sm:$0x1]
        %v246 = vperm.slane %v244, 0
        %v248 = vmul.f32 %v242, %v246
        %v249 = vadd.f32 %v240, %v248
        %s250 = scalar_lea.vmem %s176, 48 [#allocation5]
        %v251 = vld [vmem:[%s250] sm:$0xff]
        %s252 = scalar_lea.vmem [#allocation2], 6
        %v253 = vld [vmem:[%s252] sm:$0x1]
        %v255 = vperm.slane %v253, 0
        %v257 = vmul.f32 %v251, %v255
        %v258 = vadd.f32 %v249, %v257
        %s259 = scalar_lea.vmem %s176, 56 [#allocation5]
        %v260 = vld [vmem:[%s259] sm:$0xff]
        %s261 = scalar_lea.vmem [#allocation2], 7
        %v262 = vld [vmem:[%s261] sm:$0x1]
        %v264 = vperm.slane %v262, 0
        %v266 = vmul.f32 %v260, %v264
        %v267 = vadd.f32 %v258, %v266
        %s268 = scalar_lea.vmem %s176, 96 [#allocation5]
        %v269 = vld [vmem:[%s268] sm:$0xff]
        %s270 = scalar_lea.vmem [#allocation2], 8
        %v271 = vld [vmem:[%s270] sm:$0x1]
        %v273 = vperm.slane %v271, 0
        %v275 = vmul.f32 %v269, %v273
        %v276 = vadd.f32 %v267, %v275
        %s277 = scalar_lea.vmem %s176, 104 [#allocation5]
        %v278 = vld [vmem:[%s277] sm:$0xff]
        %s279 = scalar_lea.vmem [#allocation2], 9
        %v280 = vld [vmem:[%s279] sm:$0x1]
        %v282 = vperm.slane %v280, 0
        %v284 = vmul.f32 %v278, %v282
        %v285 = vadd.f32 %v276, %v284
        %s286 = scalar_lea.vmem %s176, 112 [#allocation5]
        %v287 = vld [vmem:[%s286] sm:$0xff]
        %s288 = scalar_lea.vmem [#allocation2], 10
        %v289 = vld [vmem:[%s288] sm:$0x1]
        %v291 = vperm.slane %v289, 0
        %v293 = vmul.f32 %v287, %v291
        %v294 = vadd.f32 %v285, %v293
        %s295 = scalar_lea.vmem %s176, 120 [#allocation5]
        %v296 = vld [vmem:[%s295] sm:$0xff]
        %s297 = scalar_lea.vmem [#allocation2], 11
        %v298 = vld [vmem:[%s297] sm:$0x1]
        %v300 = vperm.slane %v298, 0
        %v302 = vmul.f32 %v296, %v300
        %v303 = vadd.f32 %v294, %v302
        %s304 = scalar_lea.vmem %s176, 128 [#allocation5]
        %v305 = vld [vmem:[%s304] sm:$0xff]
        %s306 = scalar_lea.vmem [#allocation2], 12
        %v307 = vld [vmem:[%s306] sm:$0x1]
        %v309 = vperm.slane %v307, 0
        %v311 = vmul.f32 %v305, %v309
        %v312 = vadd.f32 %v303, %v311
        %s313 = scalar_lea.vmem %s176, 136 [#allocation5]
        %v314 = vld [vmem:[%s313] sm:$0xff]
        %s315 = scalar_lea.vmem [#allocation2], 13
        %v316 = vld [vmem:[%s315] sm:$0x1]
        %v318 = vperm.slane %v316, 0
        %v320 = vmul.f32 %v314, %v318
        %v321 = vadd.f32 %v312, %v320
        %s322 = scalar_lea.vmem %s176, 144 [#allocation5]
        %v323 = vld [vmem:[%s322] sm:$0xff]
        %s324 = scalar_lea.vmem [#allocation2], 14
        %v325 = vld [vmem:[%s324] sm:$0x1]
        %v327 = vperm.slane %v325, 0
        %v329 = vmul.f32 %v323, %v327
        %v330 = vadd.f32 %v321, %v329
        %s331 = scalar_lea.vmem %s176, 152 [#allocation5]
        %v332 = vld [vmem:[%s331] sm:$0xff]
        %s333 = scalar_lea.vmem [#allocation2], 15
        %v334 = vld [vmem:[%s333] sm:$0x1]
        %v336 = vperm.slane %v334, 0
        %v338 = vmul.f32 %v332, %v336
        %v339 = vadd.f32 %v330, %v338
        %340 = vst [vmem:[%s197] sm:$0xff] %v339
        %v341 = vld [vmem:[%s232] sm:$0xff]
        %s342 = scalar_lea.vmem [#allocation2], 16
        %v343 = vld [vmem:[%s342] sm:$0x1]
        %v345 = vperm.slane %v343, 0
        %v347 = vmul.f32 %v341, %v345
        %v348 = vadd.f32 %v347, 0.0
        %v349 = vld [vmem:[%s241] sm:$0xff]
        %s350 = scalar_lea.vmem [#allocation2], 17
        %v351 = vld [vmem:[%s350] sm:$0x1]
        %v353 = vperm.slane %v351, 0
        %v355 = vmul.f32 %v349, %v353
        %v356 = vadd.f32 %v348, %v355
        %v357 = vld [vmem:[%s250] sm:$0xff]
        %s358 = scalar_lea.vmem [#allocation2], 18
        %v359 = vld [vmem:[%s358] sm:$0x1]
        %v361 = vperm.slane %v359, 0
        %v363 = vmul.f32 %v357, %v361
        %v364 = vadd.f32 %v356, %v363
        %v365 = vld [vmem:[%s259] sm:$0xff]
        %s366 = scalar_lea.vmem [#allocation2], 19
        %v367 = vld [vmem:[%s366] sm:$0x1]
        %v369 = vperm.slane %v367, 0
        %v371 = vmul.f32 %v365, %v369
        %v372 = vadd.f32 %v364, %v371
        %s373 = scalar_lea.vmem %s176, 64 [#allocation5]
        %v374 = vld [vmem:[%s373] sm:$0xff]
        %s375 = scalar_lea.vmem [#allocation2], 20
        %v376 = vld [vmem:[%s375] sm:$0x1]
        %v378 = vperm.slane %v376, 0
        %v380 = vmul.f32 %v374, %v378
        %v381 = vadd.f32 %v372, %v380
        %s382 = scalar_lea.vmem %s176, 72 [#allocation5]
        %v383 = vld [vmem:[%s382] sm:$0xff]
        %s384 = scalar_lea.vmem [#allocation2], 21
        %v385 = vld [vmem:[%s384] sm:$0x1]
        %v387 = vperm.slane %v385, 0
        %v389 = vmul.f32 %v383, %v387
        %v390 = vadd.f32 %v381, %v389
        %s391 = scalar_lea.vmem %s176, 80 [#allocation5]
        %v392 = vld [vmem:[%s391] sm:$0xff]
        %s393 = scalar_lea.vmem [#allocation2], 22
        %v394 = vld [vmem:[%s393] sm:$0x1]
        %v396 = vperm.slane %v394, 0
        %v398 = vmul.f32 %v392, %v396
        %v399 = vadd.f32 %v390, %v398
        %s400 = scalar_lea.vmem %s176, 88 [#allocation5]
        %v401 = vld [vmem:[%s400] sm:$0xff]
        %s402 = scalar_lea.vmem [#allocation2], 23
        %v403 = vld [vmem:[%s402] sm:$0x1]
        %v405 = vperm.slane %v403, 0
        %v407 = vmul.f32 %v401, %v405
        %v408 = vadd.f32 %v399, %v407
        %v409 = vld [vmem:[%s304] sm:$0xff]
        %s410 = scalar_lea.vmem [#allocation2], 24
        %v411 = vld [vmem:[%s410] sm:$0x1]
        %v413 = vperm.slane %v411, 0
        %v415 = vmul.f32 %v409, %v413
        %v416 = vadd.f32 %v408, %v415
        %v417 = vld [vmem:[%s313] sm:$0xff]
        %s418 = scalar_lea.vmem [#allocation2], 25
        %v419 = vld [vmem:[%s418] sm:$0x1]
        %v421 = vperm.slane %v419, 0
        %v423 = vmul.f32 %v417, %v421
        %v424 = vadd.f32 %v416, %v423
        %v425 = vld [vmem:[%s322] sm:$0xff]
        %s426 = scalar_lea.vmem [#allocation2], 26
        %v427 = vld [vmem:[%s426] sm:$0x1]
        %v429 = vperm.slane %v427, 0
        %v431 = vmul.f32 %v425, %v429
        %v432 = vadd.f32 %v424, %v431
        %v433 = vld [vmem:[%s331] sm:$0xff]
        %s434 = scalar_lea.vmem [#allocation2], 27
        %v435 = vld [vmem:[%s434] sm:$0x1]
        %v437 = vperm.slane %v435, 0
        %v439 = vmul.f32 %v433, %v437
        %v440 = vadd.f32 %v432, %v439
        %s441 = scalar_lea.vmem %s176, 160 [#allocation5]
        %v442 = vld [vmem:[%s441] sm:$0xff]
        %s443 = scalar_lea.vmem [#allocation2], 28
        %v444 = vld [vmem:[%s443] sm:$0x1]
        %v446 = vperm.slane %v444, 0
        %v448 = vmul.f32 %v442, %v446
        %v449 = vadd.f32 %v440, %v448
        %s450 = scalar_lea.vmem %s176, 168 [#allocation5]
        %v451 = vld [vmem:[%s450] sm:$0xff]
        %s452 = scalar_lea.vmem [#allocation2], 29
        %v453 = vld [vmem:[%s452] sm:$0x1]
        %v455 = vperm.slane %v453, 0
        %v457 = vmul.f32 %v451, %v455
        %v458 = vadd.f32 %v449, %v457
        %s459 = scalar_lea.vmem %s176, 176 [#allocation5]
        %v460 = vld [vmem:[%s459] sm:$0xff]
        %s461 = scalar_lea.vmem [#allocation2], 30
        %v462 = vld [vmem:[%s461] sm:$0x1]
        %v464 = vperm.slane %v462, 0
        %v466 = vmul.f32 %v460, %v464
        %v467 = vadd.f32 %v458, %v466
        %s468 = scalar_lea.vmem %s176, 184 [#allocation5]
        %v469 = vld [vmem:[%s468] sm:$0xff]
        %s470 = scalar_lea.vmem [#allocation2], 31
        %v471 = vld [vmem:[%s470] sm:$0x1]
        %v473 = vperm.slane %v471, 0
        %v475 = vmul.f32 %v469, %v473
        %v476 = vadd.f32 %v467, %v475
        %s477 = scalar_lea.vmem %s197, 8 [#allocation7]
        %478 = vst [vmem:[%s477] sm:$0xff] %v476
        %v479 = vld [vmem:[%s268] sm:$0xff]
        %s480 = scalar_lea.vmem [#allocation2], 32
        %v481 = vld [vmem:[%s480] sm:$0x1]
        %v483 = vperm.slane %v481, 0
        %v485 = vmul.f32 %v479, %v483
        %v486 = vadd.f32 %v485, 0.0
        %v487 = vld [vmem:[%s277] sm:$0xff]
        %s488 = scalar_lea.vmem [#allocation2], 33
        %v489 = vld [vmem:[%s488] sm:$0x1]
        %v491 = vperm.slane %v489, 0
        %v493 = vmul.f32 %v487, %v491
        %v494 = vadd.f32 %v486, %v493
        %v495 = vld [vmem:[%s286] sm:$0xff]
        %s496 = scalar_lea.vmem [#allocation2], 34
        %v497 = vld [vmem:[%s496] sm:$0x1]
        %v499 = vperm.slane %v497, 0
        %v501 = vmul.f32 %v495, %v499
        %v502 = vadd.f32 %v494, %v501
        %v503 = vld [vmem:[%s295] sm:$0xff]
        %s504 = scalar_lea.vmem [#allocation2], 35
        %v505 = vld [vmem:[%s504] sm:$0x1]
        %v507 = vperm.slane %v505, 0
        %v509 = vmul.f32 %v503, %v507
        %v510 = vadd.f32 %v502, %v509
        %v511 = vld [vmem:[%s304] sm:$0xff]
        %s512 = scalar_lea.vmem [#allocation2], 36
        %v513 = vld [vmem:[%s512] sm:$0x1]
        %v515 = vperm.slane %v513, 0
        %v517 = vmul.f32 %v511, %v515
        %v518 = vadd.f32 %v510, %v517
        %v519 = vld [vmem:[%s313] sm:$0xff]
        %s520 = scalar_lea.vmem [#allocation2], 37
        %v521 = vld [vmem:[%s520] sm:$0x1]
        %v523 = vperm.slane %v521, 0
        %v525 = vmul.f32 %v519, %v523
        %v526 = vadd.f32 %v518, %v525
        %v527 = vld [vmem:[%s322] sm:$0xff]
        %s528 = scalar_lea.vmem [#allocation2], 38
        %v529 = vld [vmem:[%s528] sm:$0x1]
        %v531 = vperm.slane %v529, 0
        %v533 = vmul.f32 %v527, %v531
        %v534 = vadd.f32 %v526, %v533
        %v535 = vld [vmem:[%s331] sm:$0xff]
        %s536 = scalar_lea.vmem [#allocation2], 39
        %v537 = vld [vmem:[%s536] sm:$0x1]
        %v539 = vperm.slane %v537, 0
        %v541 = vmul.f32 %v535, %v539
        %v542 = vadd.f32 %v534, %v541
        %s543 = scalar_lea.vmem %s176, 192 [#allocation5]
        %v544 = vld [vmem:[%s543] sm:$0xff]
        %s545 = scalar_lea.vmem [#allocation2], 40
        %v546 = vld [vmem:[%s545] sm:$0x1]
        %v548 = vperm.slane %v546, 0
        %v550 = vmul.f32 %v544, %v548
        %v551 = vadd.f32 %v542, %v550
        %s552 = scalar_lea.vmem %s176, 200 [#allocation5]
        %v553 = vld [vmem:[%s552] sm:$0xff]
        %s554 = scalar_lea.vmem [#allocation2], 41
        %v555 = vld [vmem:[%s554] sm:$0x1]
        %v557 = vperm.slane %v555, 0
        %v559 = vmul.f32 %v553, %v557
        %v560 = vadd.f32 %v551, %v559
        %s561 = scalar_lea.vmem %s176, 208 [#allocation5]
        %v562 = vld [vmem:[%s561] sm:$0xff]
        %s563 = scalar_lea.vmem [#allocation2], 42
        %v564 = vld [vmem:[%s563] sm:$0x1]
        %v566 = vperm.slane %v564, 0
        %v568 = vmul.f32 %v562, %v566
        %v569 = vadd.f32 %v560, %v568
        %s570 = scalar_lea.vmem %s176, 216 [#allocation5]
        %v571 = vld [vmem:[%s570] sm:$0xff]
        %s572 = scalar_lea.vmem [#allocation2], 43
        %v573 = vld [vmem:[%s572] sm:$0x1]
        %v575 = vperm.slane %v573, 0
        %v577 = vmul.f32 %v571, %v575
        %v578 = vadd.f32 %v569, %v577
        %s579 = scalar_lea.vmem %s176, 224 [#allocation5]
        %v580 = vld [vmem:[%s579] sm:$0xff]
        %s581 = scalar_lea.vmem [#allocation2], 44
        %v582 = vld [vmem:[%s581] sm:$0x1]
        %v584 = vperm.slane %v582, 0
        %v586 = vmul.f32 %v580, %v584
        %v587 = vadd.f32 %v578, %v586
        %s588 = scalar_lea.vmem %s176, 232 [#allocation5]
        %v589 = vld [vmem:[%s588] sm:$0xff]
        %s590 = scalar_lea.vmem [#allocation2], 45
        %v591 = vld [vmem:[%s590] sm:$0x1]
        %v593 = vperm.slane %v591, 0
        %v595 = vmul.f32 %v589, %v593
        %v596 = vadd.f32 %v587, %v595
        %s597 = scalar_lea.vmem %s176, 240 [#allocation5]
        %v598 = vld [vmem:[%s597] sm:$0xff]
        %s599 = scalar_lea.vmem [#allocation2], 46
        %v600 = vld [vmem:[%s599] sm:$0x1]
        %v602 = vperm.slane %v600, 0
        %v604 = vmul.f32 %v598, %v602
        %v605 = vadd.f32 %v596, %v604
        %s606 = scalar_lea.vmem %s176, 248 [#allocation5]
        %v607 = vld [vmem:[%s606] sm:$0xff]
        %s608 = scalar_lea.vmem [#allocation2], 47
        %v609 = vld [vmem:[%s608] sm:$0x1]
        %v611 = vperm.slane %v609, 0
        %v613 = vmul.f32 %v607, %v611
        %v614 = vadd.f32 %v605, %v613
        %s615 = scalar_lea.vmem %s197, 16 [#allocation7]
        %616 = vst [vmem:[%s615] sm:$0xff] %v614
        %v617 = vld [vmem:[%s304] sm:$0xff]
        %s618 = scalar_lea.vmem [#allocation2], 48
        %v619 = vld [vmem:[%s618] sm:$0x1]
        %v621 = vperm.slane %v619, 0
        %v623 = vmul.f32 %v617, %v621
        %v624 = vadd.f32 %v623, 0.0
        %v625 = vld [vmem:[%s313] sm:$0xff]
        %s626 = scalar_lea.vmem [#allocation2], 49
        %v627 = vld [vmem:[%s626] sm:$0x1]
        %v629 = vperm.slane %v627, 0
        %v631 = vmul.f32 %v625, %v629
        %v632 = vadd.f32 %v624, %v631
        %v633 = vld [vmem:[%s322] sm:$0xff]
        %s634 = scalar_lea.vmem [#allocation2], 50
        %v635 = vld [vmem:[%s634] sm:$0x1]
        %v637 = vperm.slane %v635, 0
        %v639 = vmul.f32 %v633, %v637
        %v640 = vadd.f32 %v632, %v639
        %v641 = vld [vmem:[%s331] sm:$0xff]
        %s642 = scalar_lea.vmem [#allocation2], 51
        %v643 = vld [vmem:[%s642] sm:$0x1]
        %v645 = vperm.slane %v643, 0
        %v647 = vmul.f32 %v641, %v645
        %v648 = vadd.f32 %v640, %v647
        %v649 = vld [vmem:[%s441] sm:$0xff]
        %s650 = scalar_lea.vmem [#allocation2], 52
        %v651 = vld [vmem:[%s650] sm:$0x1]
        %v653 = vperm.slane %v651, 0
        %v655 = vmul.f32 %v649, %v653
        %v656 = vadd.f32 %v648, %v655
        %v657 = vld [vmem:[%s450] sm:$0xff]
        %s658 = scalar_lea.vmem [#allocation2], 53
        %v659 = vld [vmem:[%s658] sm:$0x1]
        %v661 = vperm.slane %v659, 0
        %v663 = vmul.f32 %v657, %v661
        %v664 = vadd.f32 %v656, %v663
        %v665 = vld [vmem:[%s459] sm:$0xff]
        %s666 = scalar_lea.vmem [#allocation2], 54
        %v667 = vld [vmem:[%s666] sm:$0x1]
        %v669 = vperm.slane %v667, 0
        %v671 = vmul.f32 %v665, %v669
        %v672 = vadd.f32 %v664, %v671
        %v673 = vld [vmem:[%s468] sm:$0xff]
        %s674 = scalar_lea.vmem [#allocation2], 55
        %v675 = vld [vmem:[%s674] sm:$0x1]
        %v677 = vperm.slane %v675, 0
        %v679 = vmul.f32 %v673, %v677
        %v680 = vadd.f32 %v672, %v679
        %v681 = vld [vmem:[%s579] sm:$0xff]
        %s682 = scalar_lea.vmem [#allocation2], 56
        %v683 = vld [vmem:[%s682] sm:$0x1]
        %v685 = vperm.slane %v683, 0
        %v687 = vmul.f32 %v681, %v685
        %v688 = vadd.f32 %v680, %v687
        %v689 = vld [vmem:[%s588] sm:$0xff]
        %s690 = scalar_lea.vmem [#allocation2], 57
        %v691 = vld [vmem:[%s690] sm:$0x1]
        %v693 = vperm.slane %v691, 0
        %v695 = vmul.f32 %v689, %v693
        %v696 = vadd.f32 %v688, %v695
        %v697 = vld [vmem:[%s597] sm:$0xff]
        %s698 = scalar_lea.vmem [#allocation2], 58
        %v699 = vld [vmem:[%s698] sm:$0x1]
        %v701 = vperm.slane %v699, 0
        %v703 = vmul.f32 %v697, %v701
        %v704 = vadd.f32 %v696, %v703
        %v705 = vld [vmem:[%s606] sm:$0xff]
        %s706 = scalar_lea.vmem [#allocation2], 59
        %v707 = vld [vmem:[%s706] sm:$0x1]
        %v709 = vperm.slane %v707, 0
        %v711 = vmul.f32 %v705, %v709
        %v712 = vadd.f32 %v704, %v711
        %s713 = scalar_lea.vmem %s176, 256 [#allocation5]
        %v714 = vld [vmem:[%s713] sm:$0xff]
        %s715 = scalar_lea.vmem [#allocation2], 60
        %v716 = vld [vmem:[%s715] sm:$0x1]
        %v718 = vperm.slane %v716, 0
        %v720 = vmul.f32 %v714, %v718
        %v721 = vadd.f32 %v712, %v720
        %s722 = scalar_lea.vmem %s176, 264 [#allocation5]
        %v723 = vld [vmem:[%s722] sm:$0xff]
        %s724 = scalar_lea.vmem [#allocation2], 61
        %v725 = vld [vmem:[%s724] sm:$0x1]
        %v727 = vperm.slane %v725, 0
        %v729 = vmul.f32 %v723, %v727
        %v730 = vadd.f32 %v721, %v729
        %s731 = scalar_lea.vmem %s176, 272 [#allocation5]
        %v732 = vld [vmem:[%s731] sm:$0xff]
        %s733 = scalar_lea.vmem [#allocation2], 62
        %v734 = vld [vmem:[%s733] sm:$0x1]
        %v736 = vperm.slane %v734, 0
        %v738 = vmul.f32 %v732, %v736
        %v739 = vadd.f32 %v730, %v738
        %s740 = scalar_lea.vmem %s176, 280 [#allocation5]
        %v741 = vld [vmem:[%s740] sm:$0xff]
        %s742 = scalar_lea.vmem [#allocation2], 63
        %v743 = vld [vmem:[%s742] sm:$0x1]
        %v745 = vperm.slane %v743, 0
        %v747 = vmul.f32 %v741, %v745
        %v748 = vadd.f32 %v739, %v747
        %s749 = scalar_lea.vmem %s197, 24 [#allocation7]
        %750 = vst [vmem:[%s749] sm:$0xff] %v748
        %s751 = sand.u32 %s91, 1
        %s752 = scalar_lea.sflag [#allocation4], %s751
        %s753 = sand.u32 %s91, 1
        %s754 = smul.addr %s753, 32
        %s755 = scalar_lea.vmem [#allocation7], %s754
        // Predicated region
        $region37: #{tpu_custom_call.1} parent=27 // pred_check
          %p756 = pneg %p101
        $region38: #{tpu_custom_call.1} parent=27 // pred_check_branch
          %758 = sbr.rel (%p756) target = $region40
        $region39: #{tpu_custom_call.1} parent=27 // pred_region
          %760 = vsyncadd %s752, 0
          %s761 = smul.addr %s24, 8
          %s762 = sadd.s32 %s25, %s761
          %s763 = smul.addr %s762, 8
          %s764 = scalar_lea.hbm %s2, %s763
          %s765 = sshll.u32 %s755, 4
          %s766 = int_to_ptr.vmem [resolvable:$true] %s765
          %s767 = sshll.u32 %s764, 4
          %s768 = int_to_ptr.hbm [resolvable:$true] %s767
          %773 = dma.vmem_to_hbm [thread:$0]  %s766, 512, %s768, %s752, 128, 256, 8
        $region40: #{tpu_custom_call.1} parent=27 // pred_fallthru
          _
      $region28: #{tpu_custom_call.1} parent=5 // pred_fallthru
        _
      %p774 = scmp.le.s32.totalorder 2, %s15
      // Predicated region
      $region41: #{tpu_custom_call.1} parent=5 // pred_check
        %p775 = pneg %p774
      $region42: #{tpu_custom_call.1} parent=5 // pred_check_branch
        %777 = sbr.rel (%p775) target = $region44
      $region43: #{tpu_custom_call.1} parent=5 // pred_region
        %s778 = ssub.s32 %s15, 2
        // Predicated region
        $region45: #{tpu_custom_call.1} parent=43 // pred_check
          %p779 = pneg %p107
        $region46: #{tpu_custom_call.1} parent=43 // pred_check_branch
          %781 = sbr.rel (%p779) target = $region48
        $region47: #{tpu_custom_call.1} parent=43 // pred_region
          %s782 = sand.u32 %s92, 1
          %s783 = scalar_lea.sflag [#allocation4], %s782
          %s784 = sand.u32 %s92, 1
          %s785 = smul.addr %s784, 32
          %s786 = scalar_lea.vmem [#allocation7], %s785
          %788 = dma.done %s783, 512
        $region48: #{tpu_custom_call.1} parent=43 // pred_fallthru
          _
      $region44: #{tpu_custom_call.1} parent=5 // pred_fallthru
        _
    $region6: #{tpu_custom_call.1} parent=1 // loop_footer
      %s19 = sadd.s32 1, %s15
    $region7: #{tpu_custom_call.1} parent=1 // loop_footer_branch
      %14 = sbr.rel target = $region3
    $region8: #{tpu_custom_call.1} parent=1 // loop_exit
      _
    %789 = vsyncpa [#allocation3], 1
    %s790 = scalar_lea.sflag [#allocation3], 1
    %791 = vsyncpa %s790, 1
    %792 = vsyncpa [#allocation6], 1
    %s793 = scalar_lea.sflag [#allocation6], 1
    %794 = vsyncpa %s793, 1
    %795 = vsyncpa [#allocation4], 1
    %s796 = scalar_lea.sflag [#allocation4], 1
    %797 = vsyncpa %s796, 1

</llo_original>
